<compile_context>
chip_gen: v7x
topology: tpu7x:2x2x1
jax: 0.10.0
libtpu: 0.0.40
codegen_flags: <defaults>
</compile_context>

<pallas_src>
import functools

import jax
import jax.numpy as jnp
from jax import lax
from jax.experimental import pallas as pl
from jax.experimental.pallas import tpu as pltpu

_EPS = 1e-5


def _shift_lanes(x, d):
    """output[..., l] = x[..., l + d] where 0 <= l + d < L, zeros elsewhere."""
    if d == 0:
        return x
    L = x.shape[-1]
    if abs(d) >= L:
        return jnp.zeros_like(x)
    zeros = jnp.zeros(x.shape[:-1] + (abs(d),), x.dtype)
    if d > 0:
        return jnp.concatenate([x[..., d:], zeros], axis=-1)
    return jnp.concatenate([zeros, x[..., :L + d]], axis=-1)


def _resblock_kernel(use_cbam, has_ds, nb, t_out, c_in, *refs):
    refs = list(refs)
    xt_ref = refs.pop(0)       # (1, 3*C_in, L) bf16  tap-unfolded input block
    seg_ref = refs.pop(0)      # (2, L) int32         row0: pos-in-batch, row1: batch id
    w1_ref = refs.pop(0)       # (C_out, 3*C_in) bf16
    s1_ref = refs.pop(0)       # (C_out, 1) f32  folded BN scale
    b1_ref = refs.pop(0)       # (C_out, 1) f32  folded BN bias
    w2_ref = refs.pop(0)       # (C_out, 3*C_out) bf16
    s2_ref = refs.pop(0)
    b2_ref = refs.pop(0)
    if has_ds:
        wd_ref = refs.pop(0)   # (C_out, C_in) bf16
        sd_ref = refs.pop(0)
        bd_ref = refs.pop(0)
    if use_cbam:
        fc1_ref = refs.pop(0)  # (C_hid, C_out) bf16
        fc2_ref = refs.pop(0)  # (C_out, C_hid) bf16
        wsp_ref = refs.pop(0)  # (2, 7) f32
    out_ref = refs.pop(0)      # (1, C_out, L) f32

    L = nb * t_out
    xt = xt_ref[0]                                  # (3*C_in, L) bf16
    seg = seg_ref[...]
    pos = seg[0:1, :]                               # (1, L) position within a batch segment
    bid = seg[1:2, :]                               # (1, L) batch id within the block

    # ---- conv1 (3 taps folded into K) + bn1 + relu -----------------------
    h1 = jnp.dot(w1_ref[...], xt, preferred_element_type=jnp.float32)
    h1 = jnp.maximum(h1 * s1_ref[...] + b1_ref[...], 0.0)

    # ---- conv2 (stride 1, pad 1): tap-concat along K, one dot ------------
    # per-batch zero padding == masking the folded-batch boundary columns.
    h1_m1 = jnp.where(pos > 0, _shift_lanes(h1, -1), 0.0)          # h1[:, t-1]
    h1_p1 = jnp.where(pos < t_out - 1, _shift_lanes(h1, 1), 0.0)   # h1[:, t+1]
    h1cat = jnp.concatenate([h1_m1, h1, h1_p1], axis=0).astype(jnp.bfloat16)
    h2 = jnp.dot(w2_ref[...], h1cat, preferred_element_type=jnp.float32)
    h2 = h2 * s2_ref[...] + b2_ref[...]

    # ---- identity / 1x1-strided-downsample + bn --------------------------
    x_center = xt[c_in:2 * c_in, :]                 # center tap == x[:, :, ::stride]
    if has_ds:
        ident = jnp.dot(wd_ref[...], x_center, preferred_element_type=jnp.float32)
        ident = ident * sd_ref[...] + bd_ref[...]
    else:
        ident = x_center.astype(jnp.float32)        # no fake eye-matmul, no extra DMA

    y = jnp.maximum(h2 + ident, 0.0)                # (C_out, L) f32

    if use_cbam:
        # ---- channel attention: per-batch avg/max pools (broadcast back over
        #      each segment so the MLP and scaling stay lane-dense). y >= 0, so
        #      masking with 0 is exact for both the sum and the max.
        inv_t = 1.0 / t_out
        seg_avg = jnp.zeros_like(y)
        seg_max = jnp.zeros_like(y)
        for b in range(nb):
            m = bid == b                                            # (1, L)
            ym = jnp.where(m, y, 0.0)
            avg_b = jnp.sum(ym, axis=1, keepdims=True) * inv_t      # (C_out, 1)
            max_b = jnp.max(ym, axis=1, keepdims=True)              # (C_out, 1)
            seg_avg = jnp.where(m, avg_b, seg_avg)
            seg_max = jnp.where(m, max_b, seg_max)

        def mlp(v):  # shared MLP evaluated over all L lane-columns at once
            h = jnp.maximum(jnp.dot(fc1_ref[...], v.astype(jnp.bfloat16),
                                    preferred_element_type=jnp.float32), 0.0)
            return jnp.dot(fc2_ref[...], h.astype(jnp.bfloat16),
                           preferred_element_type=jnp.float32)

        y = y * jax.nn.sigmoid(mlp(seg_avg) + mlp(seg_max))

        # ---- spatial attention: Conv1d(2 -> 1, kernel 7, pad 3), per-batch pad
        avg_sp = jnp.mean(y, axis=0, keepdims=True)                 # (1, L)
        max_sp = jnp.max(y, axis=0, keepdims=True)                  # (1, L)
        cat = jnp.concatenate([avg_sp, max_sp], axis=0)             # (2, L)
        wsp = wsp_ref[...]                                          # (2, 7)
        s = jnp.zeros((1, L), jnp.float32)
        for k in range(7):
            d = k - 3
            shifted = _shift_lanes(cat, d)                          # cat[:, t+d]
            valid = (pos + d >= 0) & (pos + d < t_out)
            tap = jnp.where(valid, shifted, 0.0) * wsp[:, k:k + 1]
            s = s + jnp.sum(tap, axis=0, keepdims=True)
        y = y * jax.nn.sigmoid(s)

    out_ref[0] = y.astype(out_ref.dtype)


def _pick_batch_block(n, t_out, max_lanes=2048):
    """Largest divisor of n whose folded lane width nb*t_out stays <= max_lanes.

    On v7x one may cap this further to keep >= 2 grid steps for both TensorCores.
    """
    nb = 1
    for cand in range(1, n + 1):
        if n % cand == 0 and cand * t_out <= max_lanes:
            nb = cand
    return nb


def resblock1d_pallas(x, p, *, stride=1, use_cbam=False):
    """x: (N, C_in, T) float32.  Returns (N, C_out, T_out) float32."""
    N, C_in, T = x.shape
    C_out = p['w1'].shape[0]
    T_out = (T + 2 - 3) // stride + 1
    has_ds = (stride != 1) or (C_in != C_out)

    NB = _pick_batch_block(N, T_out)
    G = N // NB
    L = NB * T_out

    # --- glue: pad + tap-unfold (handles stride & conv1 padding); the 3 taps go
    #     into the K dimension and NB batches are folded into the lane dim.    ---
    x_pad = jnp.pad(x, ((0, 0), (0, 0), (1, 1)))
    taps = [x_pad[:, :, k:k + stride * (T_out - 1) + 1:stride] for k in range(3)]
    xt = jnp.concatenate(taps, axis=1)                          # (N, 3*C_in, T_out)
    xt = xt.reshape(G, NB, 3 * C_in, T_out)
    xt = jnp.transpose(xt, (0, 2, 1, 3)).reshape(G, 3 * C_in, L)
    xt = xt.astype(jnp.bfloat16)

    lane = jnp.arange(L, dtype=jnp.int32)
    seg_map = jnp.stack([lane % T_out, lane // T_out], axis=0)  # (2, L) int32

    def fold(g, b, m, v):
        s = g / jnp.sqrt(v + _EPS)
        return (s.reshape(-1, 1).astype(jnp.float32),
                (b - m * s).reshape(-1, 1).astype(jnp.float32))

    # weight layouts matching the tap-major K ordering used in the kernel
    w1cat = jnp.transpose(p['w1'], (0, 2, 1)).reshape(C_out, 3 * C_in).astype(jnp.bfloat16)
    w2cat = jnp.transpose(p['w2'], (0, 2, 1)).reshape(C_out, 3 * C_out).astype(jnp.bfloat16)
    s1, b1 = fold(p['g1'], p['b1'], p['m1'], p['v1'])
    s2, b2 = fold(p['g2'], p['b2'], p['m2'], p['v2'])

    inputs = [xt, seg_map, w1cat, s1, b1, w2cat, s2, b2]
    if has_ds:
        wd = p['wd'][:, :, 0].astype(jnp.bfloat16)
        sd, bd = fold(p['gd'], p['bd'], p['md'], p['vd'])
        inputs += [wd, sd, bd]
    if use_cbam:
        inputs += [p['fc1'].astype(jnp.bfloat16),
                   p['fc2'].astype(jnp.bfloat16),
                   p['wsp'].astype(jnp.float32)]

    def full_spec(a):
        return pl.BlockSpec(a.shape, lambda g, nd=a.ndim: (0,) * nd)

    in_specs = [pl.BlockSpec((1, 3 * C_in, L), lambda g: (g, 0, 0))]
    in_specs += [full_spec(a) for a in inputs[1:]]

    out = pl.pallas_call(
        functools.partial(_resblock_kernel, use_cbam, has_ds, NB, T_out, C_in),
        out_shape=jax.ShapeDtypeStruct((G, C_out, L), jnp.float32),
        grid_spec=pltpu.PrefetchScalarGridSpec(
            num_scalar_prefetch=0,
            grid=(G,),
            in_specs=in_specs,
            out_specs=pl.BlockSpec((1, C_out, L), lambda g: (g, 0, 0)),
        ),
        compiler_params=pltpu.CompilerParams(dimension_semantics=("parallel",)),
    )(*inputs)

    out = out.reshape(G, C_out, NB, T_out)
    return jnp.transpose(out, (0, 2, 1, 3)).reshape(N, C_out, T_out)


# ----------------------- pure-JAX reference (for checking) -----------------------
def _conv1d(x, w, stride, padding):
    return lax.conv_general_dilated(
        x, w, window_strides=(stride,), padding=[(padding, padding)],
        dimension_numbers=('NCH', 'OIH', 'NCH'))


def resblock1d_reference(x, p, *, stride, use_cbam):
    c_out, c_in = p['w1'].shape[0], p['w1'].shape[1]

    def bn(h, g, b, m, v):
        s = g / jnp.sqrt(v + _EPS)
        return h * s[None, :, None] + (b - m * s)[None, :, None]

    out = _conv1d(x, p['w1'], stride, 1)
    out = jnp.maximum(bn(out, p['g1'], p['b1'], p['m1'], p['v1']), 0.0)
    out = _conv1d(out, p['w2'], 1, 1)
    out = bn(out, p['g2'], p['b2'], p['m2'], p['v2'])
    if stride != 1 or c_in != c_out:
        ident = _conv1d(x, p['wd'], stride, 0)
        ident = bn(ident, p['gd'], p['bd'], p['md'], p['vd'])
    else:
        ident = x
    out = jnp.maximum(out + ident, 0.0)
    if use_cbam:
        avg = jnp.mean(out, axis=2)
        mx = jnp.max(out, axis=2)
        mlp = lambda v: jnp.maximum(v @ p['fc1'].T, 0.0) @ p['fc2'].T
        scale_ch = jax.nn.sigmoid(mlp(avg) + mlp(mx))[:, :, None]
        out = out * scale_ch
        avg_sp = jnp.mean(out, axis=1, keepdims=True)
        max_sp = jnp.max(out, axis=1, keepdims=True)
        cat = jnp.concatenate([avg_sp, max_sp], axis=1)
        ssp = _conv1d(cat, p['wsp'][None], 1, 3)
        out = out * jax.nn.sigmoid(ssp)
    return out


def make_params(key, c_in, c_out, reduction=16):
    ks = jax.random.split(key, 18)
    nrm = lambda i, shape, scale=0.1: scale * jax.random.normal(ks[i], shape, jnp.float32)
    c_hid = max(c_out // reduction, 1)
    return dict(
        w1=nrm(0, (c_out, c_in, 3)),
        g1=1.0 + nrm(1, (c_out,)), b1=nrm(2, (c_out,)), m1=nrm(3, (c_out,)),
        v1=1.0 + 0.1 * jax.random.uniform(ks[4], (c_out,), jnp.float32),
        w2=nrm(5, (c_out, c_out, 3)),
        g2=1.0 + nrm(6, (c_out,)), b2=nrm(7, (c_out,)), m2=nrm(8, (c_out,)),
        v2=1.0 + 0.1 * jax.random.uniform(ks[9], (c_out,), jnp.float32),
        wd=nrm(10, (c_out, c_in, 1)),
        gd=1.0 + nrm(11, (c_out,)), bd=nrm(12, (c_out,)), md=nrm(13, (c_out,)),
        vd=1.0 + 0.1 * jax.random.uniform(ks[14], (c_out,), jnp.float32),
        fc1=nrm(15, (c_hid, c_out)),
        fc2=nrm(16, (c_out, c_hid)),
        wsp=nrm(17, (2, 7)),
    )


if __name__ == "__main__":
    key = jax.random.PRNGKey(0)
    k_p1, k_p2, k_x1, k_x2 = jax.random.split(key, 4)

    # Config A: in_ch=16 -> out_ch=32, stride=2, CBAM on (downsample path exercised).
    N, C_in, C_out, T, stride = 2, 16, 32, 32, 2
    p = make_params(k_p1, C_in, C_out)
    x = jax.random.normal(k_x1, (N, C_in, T), jnp.float32)
    y = resblock1d_pallas(x, p, stride=stride, use_cbam=True)
    jax.block_until_ready(y)
    y_ref = resblock1d_reference(x, p, stride=stride, use_cbam=True)
    assert y.shape == (N, C_out, T // stride)
    err = float(jnp.max(jnp.abs(y - y_ref)))
    assert err < 5e-2, f"config A mismatch: max abs err = {err}"

    # Config B: in_ch == out_ch, stride=1, no CBAM (plain identity path, no wd/fc DMAs).
    p2 = make_params(k_p2, C_out, C_out)
    x2 = jax.random.normal(k_x2, (N, C_out, T), jnp.float32)
    y2 = resblock1d_pallas(x2, p2, stride=1, use_cbam=False)
    jax.block_until_ready(y2)
    y2_ref = resblock1d_reference(x2, p2, stride=1, use_cbam=False)
    assert y2.shape == (N, C_out, T)
    err2 = float(jnp.max(jnp.abs(y2 - y2_ref)))
    assert err2 < 5e-2, f"config B mismatch: max abs err = {err2}"

    print("KERNEL_OK")
</pallas_src>

<mosaic_0001>
module attributes {stable_mosaic.version = 11 : i64} {
  func.func @_resblock_kernel(%arg0: i32, %arg1: memref<1x48x32xbf16, #tpu.memory_space<vmem>>, %arg2: memref<2x32xi32, #tpu.memory_space<vmem>>, %arg3: memref<32x48xbf16, #tpu.memory_space<vmem>>, %arg4: memref<32x1xf32, #tpu.memory_space<vmem>>, %arg5: memref<32x1xf32, #tpu.memory_space<vmem>>, %arg6: memref<32x96xbf16, #tpu.memory_space<vmem>>, %arg7: memref<32x1xf32, #tpu.memory_space<vmem>>, %arg8: memref<32x1xf32, #tpu.memory_space<vmem>>, %arg9: memref<32x16xbf16, #tpu.memory_space<vmem>>, %arg10: memref<32x1xf32, #tpu.memory_space<vmem>>, %arg11: memref<32x1xf32, #tpu.memory_space<vmem>>, %arg12: memref<2x32xbf16, #tpu.memory_space<vmem>>, %arg13: memref<32x2xbf16, #tpu.memory_space<vmem>>, %arg14: memref<2x7xf32, #tpu.memory_space<vmem>>, %arg15: memref<1x32x32xf32, #tpu.memory_space<vmem>>) attributes {dimension_semantics = [#tpu.dimension_semantics<parallel>], iteration_bounds = array<i64: 1>, scalar_prefetch = 0 : i64, scratch_operands = 0 : i64, tpu.core_type = #tpu.core_type<tc>, window_params = [{transform_indices = @transform_0, window_bounds = array<i64: 1, 48, 32>}, {pipeline_mode = #tpu.pipeline_mode<synchronous>, transform_indices = @transform_1, window_bounds = array<i64: 2, 32>}, {pipeline_mode = #tpu.pipeline_mode<synchronous>, transform_indices = @transform_2, window_bounds = array<i64: 32, 48>}, {pipeline_mode = #tpu.pipeline_mode<synchronous>, transform_indices = @transform_3, window_bounds = array<i64: 32, 1>}, {pipeline_mode = #tpu.pipeline_mode<synchronous>, transform_indices = @transform_4, window_bounds = array<i64: 32, 1>}, {pipeline_mode = #tpu.pipeline_mode<synchronous>, transform_indices = @transform_5, window_bounds = array<i64: 32, 96>}, {pipeline_mode = #tpu.pipeline_mode<synchronous>, transform_indices = @transform_6, window_bounds = array<i64: 32, 1>}, {pipeline_mode = #tpu.pipeline_mode<synchronous>, transform_indices = @transform_7, window_bounds = array<i64: 32, 1>}, {pipeline_mode = #tpu.pipeline_mode<synchronous>, transform_indices = @transform_8, window_bounds = array<i64: 32, 16>}, {pipeline_mode = #tpu.pipeline_mode<synchronous>, transform_indices = @transform_9, window_bounds = array<i64: 32, 1>}, {pipeline_mode = #tpu.pipeline_mode<synchronous>, transform_indices = @transform_10, window_bounds = array<i64: 32, 1>}, {pipeline_mode = #tpu.pipeline_mode<synchronous>, transform_indices = @transform_11, window_bounds = array<i64: 2, 32>}, {pipeline_mode = #tpu.pipeline_mode<synchronous>, transform_indices = @transform_12, window_bounds = array<i64: 32, 2>}, {pipeline_mode = #tpu.pipeline_mode<synchronous>, transform_indices = @transform_13, window_bounds = array<i64: 2, 7>}, {transform_indices = @transform_14, window_bounds = array<i64: 1, 32, 32>}]} {
    %c0 = arith.constant 0 : index
    %c0_0 = arith.constant 0 : index
    %c0_1 = arith.constant 0 : index
    %0 = vector.load %arg1[%c0, %c0_0, %c0_1] : memref<1x48x32xbf16, #tpu.memory_space<vmem>>, vector<1x48x32xbf16>
    %1 = vector.shape_cast %0 : vector<1x48x32xbf16> to vector<48x32xbf16>
    %c0_2 = arith.constant 0 : index
    %c0_3 = arith.constant 0 : index
    %2 = vector.load %arg2[%c0_2, %c0_3] : memref<2x32xi32, #tpu.memory_space<vmem>>, vector<2x32xi32>
    %3 = vector.extract_strided_slice %2 {offsets = [0, 0], sizes = [1, 32], strides = [1, 1]} : vector<2x32xi32> to vector<1x32xi32>
    %4 = vector.extract_strided_slice %2 {offsets = [1, 0], sizes = [1, 32], strides = [1, 1]} : vector<2x32xi32> to vector<1x32xi32>
    %c0_4 = arith.constant 0 : index
    %c0_5 = arith.constant 0 : index
    %5 = vector.load %arg3[%c0_4, %c0_5] : memref<32x48xbf16, #tpu.memory_space<vmem>>, vector<32x48xbf16>
    %cst = arith.constant dense<0.000000e+00> : vector<32x32xf32>
    %6 = tpu.matmul %5, %1, %cst {dimension_numbers = #tpu.dot_dimension_numbers<[1], [0], [0], [1], [0, 0, 1, 1], [], []>} : vector<32x48xbf16>, vector<48x32xbf16>, vector<32x32xf32> -> vector<32x32xf32>
    %c0_6 = arith.constant 0 : index
    %c0_7 = arith.constant 0 : index
    %7 = vector.load %arg4[%c0_6, %c0_7] : memref<32x1xf32, #tpu.memory_space<vmem>>, vector<32x1xf32>
    %8 = vector.broadcast %7 : vector<32x1xf32> to vector<32x32xf32>
    %9 = arith.mulf %6, %8 : vector<32x32xf32>
    %c0_8 = arith.constant 0 : index
    %c0_9 = arith.constant 0 : index
    %10 = vector.load %arg5[%c0_8, %c0_9] : memref<32x1xf32, #tpu.memory_space<vmem>>, vector<32x1xf32>
    %11 = vector.broadcast %10 : vector<32x1xf32> to vector<32x32xf32>
    %12 = arith.addf %9, %11 : vector<32x32xf32>
    %cst_10 = arith.constant 0.000000e+00 : f32
    %13 = vector.broadcast %cst_10 : f32 to vector<32x32xf32>
    %14 = arith.maximumf %12, %13 : vector<32x32xf32>
    %c0_i32 = arith.constant 0 : i32
    %15 = vector.broadcast %c0_i32 : i32 to vector<1x32xi32>
    %16 = arith.cmpi sgt, %3, %15 : vector<1x32xi32>
    %cst_11 = arith.constant 0.000000e+00 : f32
    %17 = vector.broadcast %cst_11 : f32 to vector<32x1xf32>
    %18 = vector.extract_strided_slice %14 {offsets = [0, 0], sizes = [32, 31], strides = [1, 1]} : vector<32x32xf32> to vector<32x31xf32>
    %19 = tpu.concatenate %17, %18 in 1 : vector<32x1xf32>, vector<32x31xf32> -> vector<32x32xf32>
    %cst_12 = arith.constant 0.000000e+00 : f32
    %20 = vector.shape_cast %16 : vector<1x32xi1> to vector<1x32xi1>
    %21 = vector.broadcast %20 : vector<1x32xi1> to vector<32x32xi1>
    %22 = vector.broadcast %cst_12 : f32 to vector<32x32xf32>
    %23 = arith.select %21, %19, %22 : vector<32x32xi1>, vector<32x32xf32>
    %c15_i32 = arith.constant 15 : i32
    %24 = vector.broadcast %c15_i32 : i32 to vector<1x32xi32>
    %25 = arith.cmpi slt, %3, %24 : vector<1x32xi32>
    %cst_13 = arith.constant 0.000000e+00 : f32
    %26 = vector.broadcast %cst_13 : f32 to vector<32x1xf32>
    %27 = vector.extract_strided_slice %14 {offsets = [0, 1], sizes = [32, 31], strides = [1, 1]} : vector<32x32xf32> to vector<32x31xf32>
    %28 = tpu.concatenate %27, %26 in 1 : vector<32x31xf32>, vector<32x1xf32> -> vector<32x32xf32>
    %cst_14 = arith.constant 0.000000e+00 : f32
    %29 = vector.shape_cast %25 : vector<1x32xi1> to vector<1x32xi1>
    %30 = vector.broadcast %29 : vector<1x32xi1> to vector<32x32xi1>
    %31 = vector.broadcast %cst_14 : f32 to vector<32x32xf32>
    %32 = arith.select %30, %28, %31 : vector<32x32xi1>, vector<32x32xf32>
    %33 = tpu.concatenate %23, %14, %32 in 0 : vector<32x32xf32>, vector<32x32xf32>, vector<32x32xf32> -> vector<96x32xf32>
    %34 = arith.truncf %33 : vector<96x32xf32> to vector<96x32xbf16>
    %c0_15 = arith.constant 0 : index
    %c0_16 = arith.constant 0 : index
    %35 = vector.load %arg6[%c0_15, %c0_16] : memref<32x96xbf16, #tpu.memory_space<vmem>>, vector<32x96xbf16>
    %cst_17 = arith.constant dense<0.000000e+00> : vector<32x32xf32>
    %36 = tpu.matmul %35, %34, %cst_17 {dimension_numbers = #tpu.dot_dimension_numbers<[1], [0], [0], [1], [0, 0, 1, 1], [], []>} : vector<32x96xbf16>, vector<96x32xbf16>, vector<32x32xf32> -> vector<32x32xf32>
    %c0_18 = arith.constant 0 : index
    %c0_19 = arith.constant 0 : index
    %37 = vector.load %arg7[%c0_18, %c0_19] : memref<32x1xf32, #tpu.memory_space<vmem>>, vector<32x1xf32>
    %38 = vector.broadcast %37 : vector<32x1xf32> to vector<32x32xf32>
    %39 = arith.mulf %36, %38 : vector<32x32xf32>
    %c0_20 = arith.constant 0 : index
    %c0_21 = arith.constant 0 : index
    %40 = vector.load %arg8[%c0_20, %c0_21] : memref<32x1xf32, #tpu.memory_space<vmem>>, vector<32x1xf32>
    %41 = vector.broadcast %40 : vector<32x1xf32> to vector<32x32xf32>
    %42 = arith.addf %39, %41 : vector<32x32xf32>
    %43 = vector.extract_strided_slice %1 {offsets = [16, 0], sizes = [16, 32], strides = [1, 1]} : vector<48x32xbf16> to vector<16x32xbf16>
    %c0_22 = arith.constant 0 : index
    %c0_23 = arith.constant 0 : index
    %44 = vector.load %arg9[%c0_22, %c0_23] : memref<32x16xbf16, #tpu.memory_space<vmem>>, vector<32x16xbf16>
    %cst_24 = arith.constant dense<0.000000e+00> : vector<32x32xf32>
    %45 = tpu.matmul %44, %43, %cst_24 {dimension_numbers = #tpu.dot_dimension_numbers<[1], [0], [0], [1], [0, 0, 1, 1], [], []>} : vector<32x16xbf16>, vector<16x32xbf16>, vector<32x32xf32> -> vector<32x32xf32>
    %c0_25 = arith.constant 0 : index
    %c0_26 = arith.constant 0 : index
    %46 = vector.load %arg10[%c0_25, %c0_26] : memref<32x1xf32, #tpu.memory_space<vmem>>, vector<32x1xf32>
    %47 = vector.broadcast %46 : vector<32x1xf32> to vector<32x32xf32>
    %48 = arith.mulf %45, %47 : vector<32x32xf32>
    %c0_27 = arith.constant 0 : index
    %c0_28 = arith.constant 0 : index
    %49 = vector.load %arg11[%c0_27, %c0_28] : memref<32x1xf32, #tpu.memory_space<vmem>>, vector<32x1xf32>
    %50 = vector.broadcast %49 : vector<32x1xf32> to vector<32x32xf32>
    %51 = arith.addf %48, %50 : vector<32x32xf32>
    %52 = arith.addf %42, %51 : vector<32x32xf32>
    %cst_29 = arith.constant 0.000000e+00 : f32
    %53 = vector.broadcast %cst_29 : f32 to vector<32x32xf32>
    %54 = arith.maximumf %52, %53 : vector<32x32xf32>
    %cst_30 = arith.constant 0.000000e+00 : f32
    %55 = vector.broadcast %cst_30 : f32 to vector<32x32xf32>
    %cst_31 = arith.constant 0.000000e+00 : f32
    %56 = vector.broadcast %cst_31 : f32 to vector<32x32xf32>
    %c0_i32_32 = arith.constant 0 : i32
    %57 = vector.broadcast %c0_i32_32 : i32 to vector<1x32xi32>
    %58 = arith.cmpi eq, %4, %57 : vector<1x32xi32>
    %cst_33 = arith.constant 0.000000e+00 : f32
    %59 = vector.shape_cast %58 : vector<1x32xi1> to vector<1x32xi1>
    %60 = vector.broadcast %59 : vector<1x32xi1> to vector<32x32xi1>
    %61 = vector.broadcast %cst_33 : f32 to vector<32x32xf32>
    %62 = arith.select %60, %54, %61 : vector<32x32xi1>, vector<32x32xf32>
    %cst_34 = arith.constant dense<0.000000e+00> : vector<32xf32>
    %63 = vector.multi_reduction <add>, %62, %cst_34 [1] : vector<32x32xf32> to vector<32xf32>
    %64 = vector.shape_cast %63 : vector<32xf32> to vector<32x1xf32>
    %cst_35 = arith.constant 6.250000e-02 : f32
    %65 = vector.broadcast %cst_35 : f32 to vector<32x1xf32>
    %66 = arith.mulf %64, %65 : vector<32x1xf32>
    %cst_36 = arith.constant dense<0xFF800000> : vector<32xf32>
    %67 = vector.multi_reduction <maximumf>, %62, %cst_36 [1] : vector<32x32xf32> to vector<32xf32>
    %68 = vector.shape_cast %67 : vector<32xf32> to vector<32x1xf32>
    %69 = vector.shape_cast %58 : vector<1x32xi1> to vector<1x32xi1>
    %70 = vector.broadcast %69 : vector<1x32xi1> to vector<32x32xi1>
    %71 = vector.shape_cast %66 : vector<32x1xf32> to vector<32x1xf32>
    %72 = vector.broadcast %71 : vector<32x1xf32> to vector<32x32xf32>
    %73 = arith.select %70, %72, %55 : vector<32x32xi1>, vector<32x32xf32>
    %74 = vector.shape_cast %58 : vector<1x32xi1> to vector<1x32xi1>
    %75 = vector.broadcast %74 : vector<1x32xi1> to vector<32x32xi1>
    %76 = vector.shape_cast %68 : vector<32x1xf32> to vector<32x1xf32>
    %77 = vector.broadcast %76 : vector<32x1xf32> to vector<32x32xf32>
    %78 = arith.select %75, %77, %56 : vector<32x32xi1>, vector<32x32xf32>
    %c1_i32 = arith.constant 1 : i32
    %79 = vector.broadcast %c1_i32 : i32 to vector<1x32xi32>
    %80 = arith.cmpi eq, %4, %79 : vector<1x32xi32>
    %cst_37 = arith.constant 0.000000e+00 : f32
    %81 = vector.shape_cast %80 : vector<1x32xi1> to vector<1x32xi1>
    %82 = vector.broadcast %81 : vector<1x32xi1> to vector<32x32xi1>
    %83 = vector.broadcast %cst_37 : f32 to vector<32x32xf32>
    %84 = arith.select %82, %54, %83 : vector<32x32xi1>, vector<32x32xf32>
    %cst_38 = arith.constant dense<0.000000e+00> : vector<32xf32>
    %85 = vector.multi_reduction <add>, %84, %cst_38 [1] : vector<32x32xf32> to vector<32xf32>
    %86 = vector.shape_cast %85 : vector<32xf32> to vector<32x1xf32>
    %cst_39 = arith.constant 6.250000e-02 : f32
    %87 = vector.broadcast %cst_39 : f32 to vector<32x1xf32>
    %88 = arith.mulf %86, %87 : vector<32x1xf32>
    %cst_40 = arith.constant dense<0xFF800000> : vector<32xf32>
    %89 = vector.multi_reduction <maximumf>, %84, %cst_40 [1] : vector<32x32xf32> to vector<32xf32>
    %90 = vector.shape_cast %89 : vector<32xf32> to vector<32x1xf32>
    %91 = vector.shape_cast %80 : vector<1x32xi1> to vector<1x32xi1>
    %92 = vector.broadcast %91 : vector<1x32xi1> to vector<32x32xi1>
    %93 = vector.shape_cast %88 : vector<32x1xf32> to vector<32x1xf32>
    %94 = vector.broadcast %93 : vector<32x1xf32> to vector<32x32xf32>
    %95 = arith.select %92, %94, %73 : vector<32x32xi1>, vector<32x32xf32>
    %96 = vector.shape_cast %80 : vector<1x32xi1> to vector<1x32xi1>
    %97 = vector.broadcast %96 : vector<1x32xi1> to vector<32x32xi1>
    %98 = vector.shape_cast %90 : vector<32x1xf32> to vector<32x1xf32>
    %99 = vector.broadcast %98 : vector<32x1xf32> to vector<32x32xf32>
    %100 = arith.select %97, %99, %78 : vector<32x32xi1>, vector<32x32xf32>
    %c0_41 = arith.constant 0 : index
    %c0_42 = arith.constant 0 : index
    %101 = vector.load %arg12[%c0_41, %c0_42] : memref<2x32xbf16, #tpu.memory_space<vmem>>, vector<2x32xbf16>
    %102 = arith.truncf %95 : vector<32x32xf32> to vector<32x32xbf16>
    %cst_43 = arith.constant dense<0.000000e+00> : vector<2x32xf32>
    %103 = tpu.matmul %101, %102, %cst_43 {dimension_numbers = #tpu.dot_dimension_numbers<[1], [0], [0], [1], [0, 0, 1, 1], [], []>} : vector<2x32xbf16>, vector<32x32xbf16>, vector<2x32xf32> -> vector<2x32xf32>
    %cst_44 = arith.constant 0.000000e+00 : f32
    %104 = vector.broadcast %cst_44 : f32 to vector<2x32xf32>
    %105 = arith.maximumf %103, %104 : vector<2x32xf32>
    %c0_45 = arith.constant 0 : index
    %c0_46 = arith.constant 0 : index
    %106 = vector.load %arg13[%c0_45, %c0_46] : memref<32x2xbf16, #tpu.memory_space<vmem>>, vector<32x2xbf16>
    %107 = arith.truncf %105 : vector<2x32xf32> to vector<2x32xbf16>
    %cst_47 = arith.constant dense<0.000000e+00> : vector<32x32xf32>
    %108 = tpu.matmul %106, %107, %cst_47 {dimension_numbers = #tpu.dot_dimension_numbers<[1], [0], [0], [1], [0, 0, 1, 1], [], []>} : vector<32x2xbf16>, vector<2x32xbf16>, vector<32x32xf32> -> vector<32x32xf32>
    %c0_48 = arith.constant 0 : index
    %c0_49 = arith.constant 0 : index
    %109 = vector.load %arg12[%c0_48, %c0_49] : memref<2x32xbf16, #tpu.memory_space<vmem>>, vector<2x32xbf16>
    %110 = arith.truncf %100 : vector<32x32xf32> to vector<32x32xbf16>
    %cst_50 = arith.constant dense<0.000000e+00> : vector<2x32xf32>
    %111 = tpu.matmul %109, %110, %cst_50 {dimension_numbers = #tpu.dot_dimension_numbers<[1], [0], [0], [1], [0, 0, 1, 1], [], []>} : vector<2x32xbf16>, vector<32x32xbf16>, vector<2x32xf32> -> vector<2x32xf32>
    %cst_51 = arith.constant 0.000000e+00 : f32
    %112 = vector.broadcast %cst_51 : f32 to vector<2x32xf32>
    %113 = arith.maximumf %111, %112 : vector<2x32xf32>
    %c0_52 = arith.constant 0 : index
    %c0_53 = arith.constant 0 : index
    %114 = vector.load %arg13[%c0_52, %c0_53] : memref<32x2xbf16, #tpu.memory_space<vmem>>, vector<32x2xbf16>
    %115 = arith.truncf %113 : vector<2x32xf32> to vector<2x32xbf16>
    %cst_54 = arith.constant dense<0.000000e+00> : vector<32x32xf32>
    %116 = tpu.matmul %114, %115, %cst_54 {dimension_numbers = #tpu.dot_dimension_numbers<[1], [0], [0], [1], [0, 0, 1, 1], [], []>} : vector<32x2xbf16>, vector<2x32xbf16>, vector<32x32xf32> -> vector<32x32xf32>
    %117 = arith.addf %108, %116 : vector<32x32xf32>
    %118 = arith.negf %117 : vector<32x32xf32>
    %119 = math.exp %118 : vector<32x32xf32>
    %cst_55 = arith.constant 1.000000e+00 : f32
    %120 = vector.broadcast %cst_55 : f32 to vector<32x32xf32>
    %121 = arith.addf %120, %119 : vector<32x32xf32>
    %122 = arith.divf %120, %121 : vector<32x32xf32>
    %123 = arith.mulf %54, %122 : vector<32x32xf32>
    %cst_56 = arith.constant dense<0.000000e+00> : vector<32xf32>
    %124 = vector.multi_reduction <add>, %123, %cst_56 [0] : vector<32x32xf32> to vector<32xf32>
    %125 = vector.shape_cast %124 : vector<32xf32> to vector<1x32xf32>
    %cst_57 = arith.constant 3.200000e+01 : f32
    %126 = vector.broadcast %cst_57 : f32 to vector<1x32xf32>
    %127 = arith.divf %125, %126 : vector<1x32xf32>
    %cst_58 = arith.constant dense<0xFF800000> : vector<32xf32>
    %128 = vector.multi_reduction <maximumf>, %123, %cst_58 [0] : vector<32x32xf32> to vector<32xf32>
    %129 = vector.shape_cast %128 : vector<32xf32> to vector<1x32xf32>
    %130 = tpu.concatenate %127, %129 in 0 : vector<1x32xf32>, vector<1x32xf32> -> vector<2x32xf32>
    %c0_59 = arith.constant 0 : index
    %c0_60 = arith.constant 0 : index
    %131 = vector.load %arg14[%c0_59, %c0_60] : memref<2x7xf32, #tpu.memory_space<vmem>>, vector<2x7xf32>
    %cst_61 = arith.constant 0.000000e+00 : f32
    %132 = vector.broadcast %cst_61 : f32 to vector<1x32xf32>
    %cst_62 = arith.constant 0.000000e+00 : f32
    %133 = vector.broadcast %cst_62 : f32 to vector<2x3xf32>
    %134 = vector.extract_strided_slice %130 {offsets = [0, 0], sizes = [2, 29], strides = [1, 1]} : vector<2x32xf32> to vector<2x29xf32>
    %135 = tpu.concatenate %133, %134 in 1 : vector<2x3xf32>, vector<2x29xf32> -> vector<2x32xf32>
    %c-3_i32 = arith.constant -3 : i32
    %136 = vector.broadcast %c-3_i32 : i32 to vector<1x32xi32>
    %137 = arith.addi %3, %136 : vector<1x32xi32>
    %c0_i32_63 = arith.constant 0 : i32
    %138 = vector.broadcast %c0_i32_63 : i32 to vector<1x32xi32>
    %139 = arith.cmpi sge, %137, %138 : vector<1x32xi32>
    %c-3_i32_64 = arith.constant -3 : i32
    %140 = vector.broadcast %c-3_i32_64 : i32 to vector<1x32xi32>
    %141 = arith.addi %3, %140 : vector<1x32xi32>
    %c16_i32 = arith.constant 16 : i32
    %142 = vector.broadcast %c16_i32 : i32 to vector<1x32xi32>
    %143 = arith.cmpi slt, %141, %142 : vector<1x32xi32>
    %144 = arith.andi %139, %143 : vector<1x32xi1>
    %cst_65 = arith.constant 0.000000e+00 : f32
    %145 = vector.shape_cast %144 : vector<1x32xi1> to vector<1x32xi1>
    %146 = vector.broadcast %145 : vector<1x32xi1> to vector<2x32xi1>
    %147 = vector.broadcast %cst_65 : f32 to vector<2x32xf32>
    %148 = arith.select %146, %135, %147 : vector<2x32xi1>, vector<2x32xf32>
    %149 = vector.extract_strided_slice %131 {offsets = [0, 0], sizes = [2, 1], strides = [1, 1]} : vector<2x7xf32> to vector<2x1xf32>
    %150 = vector.broadcast %149 : vector<2x1xf32> to vector<2x32xf32>
    %151 = arith.mulf %148, %150 : vector<2x32xf32>
    %cst_66 = arith.constant dense<0.000000e+00> : vector<32xf32>
    %152 = vector.multi_reduction <add>, %151, %cst_66 [0] : vector<2x32xf32> to vector<32xf32>
    %153 = vector.shape_cast %152 : vector<32xf32> to vector<1x32xf32>
    %154 = arith.addf %132, %153 : vector<1x32xf32>
    %cst_67 = arith.constant 0.000000e+00 : f32
    %155 = vector.broadcast %cst_67 : f32 to vector<2x2xf32>
    %156 = vector.extract_strided_slice %130 {offsets = [0, 0], sizes = [2, 30], strides = [1, 1]} : vector<2x32xf32> to vector<2x30xf32>
    %157 = tpu.concatenate %155, %156 in 1 : vector<2x2xf32>, vector<2x30xf32> -> vector<2x32xf32>
    %c-2_i32 = arith.constant -2 : i32
    %158 = vector.broadcast %c-2_i32 : i32 to vector<1x32xi32>
    %159 = arith.addi %3, %158 : vector<1x32xi32>
    %c0_i32_68 = arith.constant 0 : i32
    %160 = vector.broadcast %c0_i32_68 : i32 to vector<1x32xi32>
    %161 = arith.cmpi sge, %159, %160 : vector<1x32xi32>
    %c-2_i32_69 = arith.constant -2 : i32
    %162 = vector.broadcast %c-2_i32_69 : i32 to vector<1x32xi32>
    %163 = arith.addi %3, %162 : vector<1x32xi32>
    %c16_i32_70 = arith.constant 16 : i32
    %164 = vector.broadcast %c16_i32_70 : i32 to vector<1x32xi32>
    %165 = arith.cmpi slt, %163, %164 : vector<1x32xi32>
    %166 = arith.andi %161, %165 : vector<1x32xi1>
    %cst_71 = arith.constant 0.000000e+00 : f32
    %167 = vector.shape_cast %166 : vector<1x32xi1> to vector<1x32xi1>
    %168 = vector.broadcast %167 : vector<1x32xi1> to vector<2x32xi1>
    %169 = vector.broadcast %cst_71 : f32 to vector<2x32xf32>
    %170 = arith.select %168, %157, %169 : vector<2x32xi1>, vector<2x32xf32>
    %171 = vector.extract_strided_slice %131 {offsets = [0, 1], sizes = [2, 1], strides = [1, 1]} : vector<2x7xf32> to vector<2x1xf32>
    %172 = vector.broadcast %171 : vector<2x1xf32> to vector<2x32xf32>
    %173 = arith.mulf %170, %172 : vector<2x32xf32>
    %cst_72 = arith.constant dense<0.000000e+00> : vector<32xf32>
    %174 = vector.multi_reduction <add>, %173, %cst_72 [0] : vector<2x32xf32> to vector<32xf32>
    %175 = vector.shape_cast %174 : vector<32xf32> to vector<1x32xf32>
    %176 = arith.addf %154, %175 : vector<1x32xf32>
    %cst_73 = arith.constant 0.000000e+00 : f32
    %177 = vector.broadcast %cst_73 : f32 to vector<2x1xf32>
    %178 = vector.extract_strided_slice %130 {offsets = [0, 0], sizes = [2, 31], strides = [1, 1]} : vector<2x32xf32> to vector<2x31xf32>
    %179 = tpu.concatenate %177, %178 in 1 : vector<2x1xf32>, vector<2x31xf32> -> vector<2x32xf32>
    %c-1_i32 = arith.constant -1 : i32
    %180 = vector.broadcast %c-1_i32 : i32 to vector<1x32xi32>
    %181 = arith.addi %3, %180 : vector<1x32xi32>
    %c0_i32_74 = arith.constant 0 : i32
    %182 = vector.broadcast %c0_i32_74 : i32 to vector<1x32xi32>
    %183 = arith.cmpi sge, %181, %182 : vector<1x32xi32>
    %c-1_i32_75 = arith.constant -1 : i32
    %184 = vector.broadcast %c-1_i32_75 : i32 to vector<1x32xi32>
    %185 = arith.addi %3, %184 : vector<1x32xi32>
    %c16_i32_76 = arith.constant 16 : i32
    %186 = vector.broadcast %c16_i32_76 : i32 to vector<1x32xi32>
    %187 = arith.cmpi slt, %185, %186 : vector<1x32xi32>
    %188 = arith.andi %183, %187 : vector<1x32xi1>
    %cst_77 = arith.constant 0.000000e+00 : f32
    %189 = vector.shape_cast %188 : vector<1x32xi1> to vector<1x32xi1>
    %190 = vector.broadcast %189 : vector<1x32xi1> to vector<2x32xi1>
    %191 = vector.broadcast %cst_77 : f32 to vector<2x32xf32>
    %192 = arith.select %190, %179, %191 : vector<2x32xi1>, vector<2x32xf32>
    %193 = vector.extract_strided_slice %131 {offsets = [0, 2], sizes = [2, 1], strides = [1, 1]} : vector<2x7xf32> to vector<2x1xf32>
    %194 = vector.broadcast %193 : vector<2x1xf32> to vector<2x32xf32>
    %195 = arith.mulf %192, %194 : vector<2x32xf32>
    %cst_78 = arith.constant dense<0.000000e+00> : vector<32xf32>
    %196 = vector.multi_reduction <add>, %195, %cst_78 [0] : vector<2x32xf32> to vector<32xf32>
    %197 = vector.shape_cast %196 : vector<32xf32> to vector<1x32xf32>
    %198 = arith.addf %176, %197 : vector<1x32xf32>
    %c0_i32_79 = arith.constant 0 : i32
    %199 = vector.broadcast %c0_i32_79 : i32 to vector<1x32xi32>
    %200 = arith.addi %3, %199 : vector<1x32xi32>
    %c0_i32_80 = arith.constant 0 : i32
    %201 = vector.broadcast %c0_i32_80 : i32 to vector<1x32xi32>
    %202 = arith.cmpi sge, %200, %201 : vector<1x32xi32>
    %c0_i32_81 = arith.constant 0 : i32
    %203 = vector.broadcast %c0_i32_81 : i32 to vector<1x32xi32>
    %204 = arith.addi %3, %203 : vector<1x32xi32>
    %c16_i32_82 = arith.constant 16 : i32
    %205 = vector.broadcast %c16_i32_82 : i32 to vector<1x32xi32>
    %206 = arith.cmpi slt, %204, %205 : vector<1x32xi32>
    %207 = arith.andi %202, %206 : vector<1x32xi1>
    %cst_83 = arith.constant 0.000000e+00 : f32
    %208 = vector.shape_cast %207 : vector<1x32xi1> to vector<1x32xi1>
    %209 = vector.broadcast %208 : vector<1x32xi1> to vector<2x32xi1>
    %210 = vector.broadcast %cst_83 : f32 to vector<2x32xf32>
    %211 = arith.select %209, %130, %210 : vector<2x32xi1>, vector<2x32xf32>
    %212 = vector.extract_strided_slice %131 {offsets = [0, 3], sizes = [2, 1], strides = [1, 1]} : vector<2x7xf32> to vector<2x1xf32>
    %213 = vector.broadcast %212 : vector<2x1xf32> to vector<2x32xf32>
    %214 = arith.mulf %211, %213 : vector<2x32xf32>
    %cst_84 = arith.constant dense<0.000000e+00> : vector<32xf32>
    %215 = vector.multi_reduction <add>, %214, %cst_84 [0] : vector<2x32xf32> to vector<32xf32>
    %216 = vector.shape_cast %215 : vector<32xf32> to vector<1x32xf32>
    %217 = arith.addf %198, %216 : vector<1x32xf32>
    %cst_85 = arith.constant 0.000000e+00 : f32
    %218 = vector.broadcast %cst_85 : f32 to vector<2x1xf32>
    %219 = vector.extract_strided_slice %130 {offsets = [0, 1], sizes = [2, 31], strides = [1, 1]} : vector<2x32xf32> to vector<2x31xf32>
    %220 = tpu.concatenate %219, %218 in 1 : vector<2x31xf32>, vector<2x1xf32> -> vector<2x32xf32>
    %c1_i32_86 = arith.constant 1 : i32
    %221 = vector.broadcast %c1_i32_86 : i32 to vector<1x32xi32>
    %222 = arith.addi %3, %221 : vector<1x32xi32>
    %c0_i32_87 = arith.constant 0 : i32
    %223 = vector.broadcast %c0_i32_87 : i32 to vector<1x32xi32>
    %224 = arith.cmpi sge, %222, %223 : vector<1x32xi32>
    %c1_i32_88 = arith.constant 1 : i32
    %225 = vector.broadcast %c1_i32_88 : i32 to vector<1x32xi32>
    %226 = arith.addi %3, %225 : vector<1x32xi32>
    %c16_i32_89 = arith.constant 16 : i32
    %227 = vector.broadcast %c16_i32_89 : i32 to vector<1x32xi32>
    %228 = arith.cmpi slt, %226, %227 : vector<1x32xi32>
    %229 = arith.andi %224, %228 : vector<1x32xi1>
    %cst_90 = arith.constant 0.000000e+00 : f32
    %230 = vector.shape_cast %229 : vector<1x32xi1> to vector<1x32xi1>
    %231 = vector.broadcast %230 : vector<1x32xi1> to vector<2x32xi1>
    %232 = vector.broadcast %cst_90 : f32 to vector<2x32xf32>
    %233 = arith.select %231, %220, %232 : vector<2x32xi1>, vector<2x32xf32>
    %234 = vector.extract_strided_slice %131 {offsets = [0, 4], sizes = [2, 1], strides = [1, 1]} : vector<2x7xf32> to vector<2x1xf32>
    %235 = vector.broadcast %234 : vector<2x1xf32> to vector<2x32xf32>
    %236 = arith.mulf %233, %235 : vector<2x32xf32>
    %cst_91 = arith.constant dense<0.000000e+00> : vector<32xf32>
    %237 = vector.multi_reduction <add>, %236, %cst_91 [0] : vector<2x32xf32> to vector<32xf32>
    %238 = vector.shape_cast %237 : vector<32xf32> to vector<1x32xf32>
    %239 = arith.addf %217, %238 : vector<1x32xf32>
    %cst_92 = arith.constant 0.000000e+00 : f32
    %240 = vector.broadcast %cst_92 : f32 to vector<2x2xf32>
    %241 = vector.extract_strided_slice %130 {offsets = [0, 2], sizes = [2, 30], strides = [1, 1]} : vector<2x32xf32> to vector<2x30xf32>
    %242 = tpu.concatenate %241, %240 in 1 : vector<2x30xf32>, vector<2x2xf32> -> vector<2x32xf32>
    %c2_i32 = arith.constant 2 : i32
    %243 = vector.broadcast %c2_i32 : i32 to vector<1x32xi32>
    %244 = arith.addi %3, %243 : vector<1x32xi32>
    %c0_i32_93 = arith.constant 0 : i32
    %245 = vector.broadcast %c0_i32_93 : i32 to vector<1x32xi32>
    %246 = arith.cmpi sge, %244, %245 : vector<1x32xi32>
    %c2_i32_94 = arith.constant 2 : i32
    %247 = vector.broadcast %c2_i32_94 : i32 to vector<1x32xi32>
    %248 = arith.addi %3, %247 : vector<1x32xi32>
    %c16_i32_95 = arith.constant 16 : i32
    %249 = vector.broadcast %c16_i32_95 : i32 to vector<1x32xi32>
    %250 = arith.cmpi slt, %248, %249 : vector<1x32xi32>
    %251 = arith.andi %246, %250 : vector<1x32xi1>
    %cst_96 = arith.constant 0.000000e+00 : f32
    %252 = vector.shape_cast %251 : vector<1x32xi1> to vector<1x32xi1>
    %253 = vector.broadcast %252 : vector<1x32xi1> to vector<2x32xi1>
    %254 = vector.broadcast %cst_96 : f32 to vector<2x32xf32>
    %255 = arith.select %253, %242, %254 : vector<2x32xi1>, vector<2x32xf32>
    %256 = vector.extract_strided_slice %131 {offsets = [0, 5], sizes = [2, 1], strides = [1, 1]} : vector<2x7xf32> to vector<2x1xf32>
    %257 = vector.broadcast %256 : vector<2x1xf32> to vector<2x32xf32>
    %258 = arith.mulf %255, %257 : vector<2x32xf32>
    %cst_97 = arith.constant dense<0.000000e+00> : vector<32xf32>
    %259 = vector.multi_reduction <add>, %258, %cst_97 [0] : vector<2x32xf32> to vector<32xf32>
    %260 = vector.shape_cast %259 : vector<32xf32> to vector<1x32xf32>
    %261 = arith.addf %239, %260 : vector<1x32xf32>
    %cst_98 = arith.constant 0.000000e+00 : f32
    %262 = vector.broadcast %cst_98 : f32 to vector<2x3xf32>
    %263 = vector.extract_strided_slice %130 {offsets = [0, 3], sizes = [2, 29], strides = [1, 1]} : vector<2x32xf32> to vector<2x29xf32>
    %264 = tpu.concatenate %263, %262 in 1 : vector<2x29xf32>, vector<2x3xf32> -> vector<2x32xf32>
    %c3_i32 = arith.constant 3 : i32
    %265 = vector.broadcast %c3_i32 : i32 to vector<1x32xi32>
    %266 = arith.addi %3, %265 : vector<1x32xi32>
    %c0_i32_99 = arith.constant 0 : i32
    %267 = vector.broadcast %c0_i32_99 : i32 to vector<1x32xi32>
    %268 = arith.cmpi sge, %266, %267 : vector<1x32xi32>
    %c3_i32_100 = arith.constant 3 : i32
    %269 = vector.broadcast %c3_i32_100 : i32 to vector<1x32xi32>
    %270 = arith.addi %3, %269 : vector<1x32xi32>
    %c16_i32_101 = arith.constant 16 : i32
    %271 = vector.broadcast %c16_i32_101 : i32 to vector<1x32xi32>
    %272 = arith.cmpi slt, %270, %271 : vector<1x32xi32>
    %273 = arith.andi %268, %272 : vector<1x32xi1>
    %cst_102 = arith.constant 0.000000e+00 : f32
    %274 = vector.shape_cast %273 : vector<1x32xi1> to vector<1x32xi1>
    %275 = vector.broadcast %274 : vector<1x32xi1> to vector<2x32xi1>
    %276 = vector.broadcast %cst_102 : f32 to vector<2x32xf32>
    %277 = arith.select %275, %264, %276 : vector<2x32xi1>, vector<2x32xf32>
    %278 = vector.extract_strided_slice %131 {offsets = [0, 6], sizes = [2, 1], strides = [1, 1]} : vector<2x7xf32> to vector<2x1xf32>
    %279 = vector.broadcast %278 : vector<2x1xf32> to vector<2x32xf32>
    %280 = arith.mulf %277, %279 : vector<2x32xf32>
    %cst_103 = arith.constant dense<0.000000e+00> : vector<32xf32>
    %281 = vector.multi_reduction <add>, %280, %cst_103 [0] : vector<2x32xf32> to vector<32xf32>
    %282 = vector.shape_cast %281 : vector<32xf32> to vector<1x32xf32>
    %283 = arith.addf %261, %282 : vector<1x32xf32>
    %284 = arith.negf %283 : vector<1x32xf32>
    %285 = math.exp %284 : vector<1x32xf32>
    %cst_104 = arith.constant 1.000000e+00 : f32
    %286 = vector.broadcast %cst_104 : f32 to vector<1x32xf32>
    %287 = arith.addf %286, %285 : vector<1x32xf32>
    %288 = arith.divf %286, %287 : vector<1x32xf32>
    %289 = vector.broadcast %288 : vector<1x32xf32> to vector<32x32xf32>
    %290 = arith.mulf %123, %289 : vector<32x32xf32>
    %c0_105 = arith.constant 0 : index
    %c0_106 = arith.constant 0 : index
    %c0_107 = arith.constant 0 : index
    %291 = vector.load %arg15[%c0_105, %c0_106, %c0_107] : memref<1x32x32xf32, #tpu.memory_space<vmem>>, vector<1x32x32xf32>
    %292 = vector.shape_cast %291 : vector<1x32x32xf32> to vector<32x32xf32>
    %293 = vector.shape_cast %290 : vector<32x32xf32> to vector<1x32x32xf32>
    tpu.vector_store %arg15[%c0_105, %c0_106, %c0_107], %293 {strides = array<i32>} : memref<1x32x32xf32, #tpu.memory_space<vmem>>, vector<1x32x32xf32>,
    return
  }
  func.func @transform_0(%arg0: i32) -> (i32, i32, i32) {
    %c0_i32 = arith.constant 0 : i32
    %c0_i32_0 = arith.constant 0 : i32
    %c0_i32_1 = arith.constant 0 : i32
    return %arg0, %c0_i32, %c0_i32_0 : i32, i32, i32
  }
  func.func @transform_1(%arg0: i32) -> (i32, i32) {
    %c0_i32 = arith.constant 0 : i32
    %c0_i32_0 = arith.constant 0 : i32
    %c0_i32_1 = arith.constant 0 : i32
    return %c0_i32, %c0_i32_0 : i32, i32
  }
  func.func @transform_2(%arg0: i32) -> (i32, i32) {
    %c0_i32 = arith.constant 0 : i32
    %c0_i32_0 = arith.constant 0 : i32
    %c0_i32_1 = arith.constant 0 : i32
    return %c0_i32, %c0_i32_0 : i32, i32
  }
  func.func @transform_3(%arg0: i32) -> (i32, i32) {
    %c0_i32 = arith.constant 0 : i32
    %c0_i32_0 = arith.constant 0 : i32
    %c0_i32_1 = arith.constant 0 : i32
    return %c0_i32, %c0_i32_0 : i32, i32
  }
  func.func @transform_4(%arg0: i32) -> (i32, i32) {
    %c0_i32 = arith.constant 0 : i32
    %c0_i32_0 = arith.constant 0 : i32
    %c0_i32_1 = arith.constant 0 : i32
    return %c0_i32, %c0_i32_0 : i32, i32
  }
  func.func @transform_5(%arg0: i32) -> (i32, i32) {
    %c0_i32 = arith.constant 0 : i32
    %c0_i32_0 = arith.constant 0 : i32
    %c0_i32_1 = arith.constant 0 : i32
    return %c0_i32, %c0_i32_0 : i32, i32
  }
  func.func @transform_6(%arg0: i32) -> (i32, i32) {
    %c0_i32 = arith.constant 0 : i32
    %c0_i32_0 = arith.constant 0 : i32
    %c0_i32_1 = arith.constant 0 : i32
    return %c0_i32, %c0_i32_0 : i32, i32
  }
  func.func @transform_7(%arg0: i32) -> (i32, i32) {
    %c0_i32 = arith.constant 0 : i32
    %c0_i32_0 = arith.constant 0 : i32
    %c0_i32_1 = arith.constant 0 : i32
    return %c0_i32, %c0_i32_0 : i32, i32
  }
  func.func @transform_8(%arg0: i32) -> (i32, i32) {
    %c0_i32 = arith.constant 0 : i32
    %c0_i32_0 = arith.constant 0 : i32
    %c0_i32_1 = arith.constant 0 : i32
    return %c0_i32, %c0_i32_0 : i32, i32
  }
  func.func @transform_9(%arg0: i32) -> (i32, i32) {
    %c0_i32 = arith.constant 0 : i32
    %c0_i32_0 = arith.constant 0 : i32
    %c0_i32_1 = arith.constant 0 : i32
    return %c0_i32, %c0_i32_0 : i32, i32
  }
  func.func @transform_10(%arg0: i32) -> (i32, i32) {
    %c0_i32 = arith.constant 0 : i32
    %c0_i32_0 = arith.constant 0 : i32
    %c0_i32_1 = arith.constant 0 : i32
    return %c0_i32, %c0_i32_0 : i32, i32
  }
  func.func @transform_11(%arg0: i32) -> (i32, i32) {
    %c0_i32 = arith.constant 0 : i32
    %c0_i32_0 = arith.constant 0 : i32
    %c0_i32_1 = arith.constant 0 : i32
    return %c0_i32, %c0_i32_0 : i32, i32
  }
  func.func @transform_12(%arg0: i32) -> (i32, i32) {
    %c0_i32 = arith.constant 0 : i32
    %c0_i32_0 = arith.constant 0 : i32
    %c0_i32_1 = arith.constant 0 : i32
    return %c0_i32, %c0_i32_0 : i32, i32
  }
  func.func @transform_13(%arg0: i32) -> (i32, i32) {
    %c0_i32 = arith.constant 0 : i32
    %c0_i32_0 = arith.constant 0 : i32
    %c0_i32_1 = arith.constant 0 : i32
    return %c0_i32, %c0_i32_0 : i32, i32
  }
  func.func @transform_14(%arg0: i32) -> (i32, i32, i32) {
    %c0_i32 = arith.constant 0 : i32
    %c0_i32_0 = arith.constant 0 : i32
    %c0_i32_1 = arith.constant 0 : i32
    return %arg0, %c0_i32, %c0_i32_0 : i32, i32, i32
  }
}

</mosaic_0001>

<llo_original>
// kernel: tpu_custom_call.1
$region0: #{tpu_custom_call.1}
  #allocation0 [shape = 'u32[]', space=smem, size = 0x4, offset = 0x4, fixed_abs, tag = 'smem constant byte address 0x4 - core index']
  #allocation1 [shape = 'u32[144,128]{1,0:T(1,128)}', space=vmem, size = 0x12000, scoped, tag = 'internal scratch']
  %s0 = inlined_call_operand.vmem [shape: bf16[1,48,32], index: 0, kind: input, shape index: {}]
  %s1 = inlined_call_operand.vmem [shape: s32[2,32], index: 1, kind: input, shape index: {}]
  %s2 = inlined_call_operand.vmem [shape: bf16[32,48], index: 2, kind: input, shape index: {}]
  %s3 = inlined_call_operand.vmem [shape: f32[32,1], index: 3, kind: input, shape index: {}]
  %s4 = inlined_call_operand.vmem [shape: f32[32,1], index: 4, kind: input, shape index: {}]
  %s5 = inlined_call_operand.vmem [shape: bf16[32,96], index: 5, kind: input, shape index: {}]
  %s6 = inlined_call_operand.vmem [shape: f32[32,1], index: 6, kind: input, shape index: {}]
  %s7 = inlined_call_operand.vmem [shape: f32[32,1], index: 7, kind: input, shape index: {}]
  %s8 = inlined_call_operand.vmem [shape: bf16[32,16], index: 8, kind: input, shape index: {}]
  %s9 = inlined_call_operand.vmem [shape: f32[32,1], index: 9, kind: input, shape index: {}]
  %s10 = inlined_call_operand.vmem [shape: f32[32,1], index: 10, kind: input, shape index: {}]
  %s11 = inlined_call_operand.vmem [shape: bf16[2,32], index: 11, kind: input, shape index: {}]
  %s12 = inlined_call_operand.vmem [shape: bf16[32,2], index: 12, kind: input, shape index: {}]
  %s13 = inlined_call_operand.vmem [shape: f32[2,7], index: 13, kind: input, shape index: {}]
  %s14 = inlined_call_operand.hbm [shape: f32[1,32,32], index: 14, kind: output, shape index: {}]
  %s15 = sld [smem:[#allocation0]]
  $region66: #{tpu_custom_call.1} parent=0
    _
  %s17 = ssub.s32 1, %s15
  %s18 = scalar_select 0, %s17, %s15
  $region1: #{tpu_custom_call.1} parent=0
    #allocation2 [shape = 'u8[16384]{0}', space=vmem, size = 0x4000, scoped, tag = 'output window, operand 0, single buffered']
    #allocation3 [shape = 's32[1]{0}', space=sflag, size = 0x4, scoped, tag = 'scoped memory for tpu_custom_call.1']
    %19 = vsyncpa [#allocation3], 0
    // Predicated region
    $region2: #{tpu_custom_call.1} parent=1 // pred_check
      _
    $region3: #{tpu_custom_call.1} parent=1 // pred_check_branch
      %21 = sbr.rel (0) target = $region5
    $region4: #{tpu_custom_call.1} parent=1 // pred_region
      _
    $region5: #{tpu_custom_call.1} parent=1 // pred_fallthru
      _
    // Predicated region
    $region6: #{tpu_custom_call.1} parent=1 // pred_check
      _
    $region7: #{tpu_custom_call.1} parent=1 // pred_check_branch
      %23 = sbr.rel (0) target = $region9
    $region8: #{tpu_custom_call.1} parent=1 // pred_region
      _
    $region9: #{tpu_custom_call.1} parent=1 // pred_fallthru
      _
    // Predicated region
    $region10: #{tpu_custom_call.1} parent=1 // pred_check
      _
    $region11: #{tpu_custom_call.1} parent=1 // pred_check_branch
      %25 = sbr.rel (0) target = $region13
    $region12: #{tpu_custom_call.1} parent=1 // pred_region
      _
    $region13: #{tpu_custom_call.1} parent=1 // pred_fallthru
      _
    // Predicated region
    $region14: #{tpu_custom_call.1} parent=1 // pred_check
      _
    $region15: #{tpu_custom_call.1} parent=1 // pred_check_branch
      %27 = sbr.rel (0) target = $region17
    $region16: #{tpu_custom_call.1} parent=1 // pred_region
      _
    $region17: #{tpu_custom_call.1} parent=1 // pred_fallthru
      _
    // Predicated region
    $region18: #{tpu_custom_call.1} parent=1 // pred_check
      _
    $region19: #{tpu_custom_call.1} parent=1 // pred_check_branch
      %29 = sbr.rel (0) target = $region21
    $region20: #{tpu_custom_call.1} parent=1 // pred_region
      _
    $region21: #{tpu_custom_call.1} parent=1 // pred_fallthru
      _
    // Predicated region
    $region22: #{tpu_custom_call.1} parent=1 // pred_check
      _
    $region23: #{tpu_custom_call.1} parent=1 // pred_check_branch
      %31 = sbr.rel (0) target = $region25
    $region24: #{tpu_custom_call.1} parent=1 // pred_region
      _
    $region25: #{tpu_custom_call.1} parent=1 // pred_fallthru
      _
    // Predicated region
    $region26: #{tpu_custom_call.1} parent=1 // pred_check
      _
    $region27: #{tpu_custom_call.1} parent=1 // pred_check_branch
      %33 = sbr.rel (0) target = $region29
    $region28: #{tpu_custom_call.1} parent=1 // pred_region
      _
    $region29: #{tpu_custom_call.1} parent=1 // pred_fallthru
      _
    // Predicated region
    $region30: #{tpu_custom_call.1} parent=1 // pred_check
      _
    $region31: #{tpu_custom_call.1} parent=1 // pred_check_branch
      %35 = sbr.rel (0) target = $region33
    $region32: #{tpu_custom_call.1} parent=1 // pred_region
      _
    $region33: #{tpu_custom_call.1} parent=1 // pred_fallthru
      _
    // Predicated region
    $region34: #{tpu_custom_call.1} parent=1 // pred_check
      _
    $region35: #{tpu_custom_call.1} parent=1 // pred_check_branch
      %37 = sbr.rel (0) target = $region37
    $region36: #{tpu_custom_call.1} parent=1 // pred_region
      _
    $region37: #{tpu_custom_call.1} parent=1 // pred_fallthru
      _
    // Predicated region
    $region38: #{tpu_custom_call.1} parent=1 // pred_check
      _
    $region39: #{tpu_custom_call.1} parent=1 // pred_check_branch
      %39 = sbr.rel (0) target = $region41
    $region40: #{tpu_custom_call.1} parent=1 // pred_region
      _
    $region41: #{tpu_custom_call.1} parent=1 // pred_fallthru
      _
    // Predicated region
    $region42: #{tpu_custom_call.1} parent=1 // pred_check
      _
    $region43: #{tpu_custom_call.1} parent=1 // pred_check_branch
      %41 = sbr.rel (0) target = $region45
    $region44: #{tpu_custom_call.1} parent=1 // pred_region
      _
    $region45: #{tpu_custom_call.1} parent=1 // pred_fallthru
      _
    // Predicated region
    $region46: #{tpu_custom_call.1} parent=1 // pred_check
      _
    $region47: #{tpu_custom_call.1} parent=1 // pred_check_branch
      %43 = sbr.rel (0) target = $region49
    $region48: #{tpu_custom_call.1} parent=1 // pred_region
      _
    $region49: #{tpu_custom_call.1} parent=1 // pred_fallthru
      _
    // Predicated region
    $region50: #{tpu_custom_call.1} parent=1 // pred_check
      _
    $region51: #{tpu_custom_call.1} parent=1 // pred_check_branch
      %45 = sbr.rel (0) target = $region53
    $region52: #{tpu_custom_call.1} parent=1 // pred_region
      _
    $region53: #{tpu_custom_call.1} parent=1 // pred_fallthru
      _
    // Predicated region
    $region54: #{tpu_custom_call.1} parent=1 // pred_check
      _
    $region55: #{tpu_custom_call.1} parent=1 // pred_check_branch
      %47 = sbr.rel (0) target = $region57
    $region56: #{tpu_custom_call.1} parent=1 // pred_region
      _
    $region57: #{tpu_custom_call.1} parent=1 // pred_fallthru
      _
    %v49 = vld [vmem:[%s0] sm:$0xf]
    %v50 = vld [vmem:[%s0 + $0x4] sm:$0xf]
    %v51 = vld [vmem:[%s0 + $0x8] sm:$0xf]
    %v52 = vld [vmem:[%s0 + $0xc] sm:$0xf]
    %v53 = vld [vmem:[%s0 + $0x10] sm:$0xf]
    %v54 = vld [vmem:[%s0 + $0x14] sm:$0xf]
    %v55 = vld [vmem:[%s1] sm:$0x3]
    %v56 = vld [vmem:[%s2] sm:$0xf]
    %v57 = vld [vmem:[%s2 + $0x4] sm:$0xf]
    %v58 = vld [vmem:[%s2 + $0x8] sm:$0xf]
    %v59 = vld [vmem:[%s2 + $0xc] sm:$0xf]
    %v64 = vunpack.c.l.b16 %v56
    %v65 = vunpack.c.l.b16 %v57
    %v66 = vunpack.c.l.b16 %v58
    %v67 = vunpack.c.l.b16 %v59
    %v68 = vpack.c.b16 %v65, %v64
    %v69 = vpack.c.b16 %v67, %v66
    %v76 = vunpack.c.l.b16 %v49
    %v77 = vunpack.c.l.b16 %v50
    %v78 = vunpack.c.l.b16 %v51
    %v79 = vunpack.c.l.b16 %v52
    %v80 = vunpack.c.l.b16 %v53
    %v81 = vunpack.c.l.b16 %v54
    %v82 = vpack.c.b16 %v77, %v76
    %v83 = vpack.c.b16 %v79, %v78
    %v84 = vpack.c.b16 %v81, %v80
    %vm88 = vcmask 392192
    %v90 = vsel %vm88, %v68, 0
    %v93 = vsel %vm88, %v69, 0
    %95 = vmatprep.subr.bf16.mxu0 0
    %96 = vmatpush1.bf16.msra.mxu0 %v82
    %97 = vmatprep.subr.bf16.mxu0 0
    %98 = vmatpush1.bf16.msra.mxu0 %v83
    %99 = vmatprep.subr.bf16.mxu0 0
    %100 = vmatpush1.bf16.msra.mxu0 %v84
    %101 = vmatprep.subr.bf16.mxu0 0
    %102 = vmatpush1.bf16.msra.mxu0 0
    %103 = vmatprep.subr.bf16.mxu0 0
    %104 = vmatpush1.bf16.msra.mxu0 0
    %105 = vmatprep.subr.bf16.mxu0 0
    %106 = vmatpush1.bf16.msra.mxu0 0
    %107 = vmatprep.subr.bf16.mxu0 0
    %108 = vmatpush1.bf16.msra.mxu0 0
    %109 = vmatprep.subr.bf16.mxu0 0
    %110 = vmatpush1.bf16.msra.mxu0 0
    %111 = vmatprep.subr.bf16.mxu0 0
    %112 = vmatpush1.bf16.msra.mxu0 0
    %113 = vmatprep.subr.bf16.mxu0 0
    %114 = vmatpush1.bf16.msra.mxu0 0
    %115 = vmatprep.subr.bf16.mxu0 0
    %116 = vmatpush1.bf16.msra.mxu0 0
    %117 = vmatprep.subr.bf16.mxu0 0
    %118 = vmatpush1.bf16.msra.mxu0 0
    %119 = vmatprep.subr.bf16.mxu0 0
    %120 = vmatpush1.bf16.msra.mxu0 0
    %121 = vmatprep.subr.bf16.mxu0 0
    %122 = vmatpush1.bf16.msra.mxu0 0
    %123 = vmatprep.subr.bf16.mxu0 0
    %124 = vmatpush1.bf16.msra.mxu0 0
    %125 = vmatprep.subr.bf16.mxu0 0
    %126 = vmatpush1.bf16.msra.mxu0 0
    %127 = vmatprep.mubr.bf16.mxu0 0
    %128 = vmatmul.mubr.bf16.gmra.mrb[0].mxu0 %v90
    %v129 = vpop.f32.mrb[0].mxu0
    %v130 = vadd.f32 0.0, %v129
    %v131 = vpop.f32.mrb[0].mxu0
    %v132 = vpop.f32.mrb[0].mxu0
    %v133 = vadd.f32 0.0, %v132
    %v134 = vpop.f32.mrb[0].mxu0
    %135 = vmatprep.mubr.bf16.mxu0 0
    %136 = vmatmul.mubr.bf16.gmra.mrb[0].mxu0 %v93
    %v137 = vpop.f32.mrb[0].mxu0
    %v138 = vadd.f32 0.0, %v137
    %v139 = vpop.f32.mrb[0].mxu0
    %v140 = vpop.f32.mrb[0].mxu0
    %v141 = vadd.f32 0.0, %v140
    %v142 = vpop.f32.mrb[0].mxu0
    %143 = vdwg.mxu0
    %v144 = vld [vmem:[%s3] sm:$0xff]
    %v145 = vld [vmem:[%s3 + $0x8] sm:$0xff]
    %v146 = vld [vmem:[%s3 + $0x10] sm:$0xff]
    %v147 = vld [vmem:[%s3 + $0x18] sm:$0xff]
    %149 = vset.pattern.permute.xlu0 0
    %150 = vperm.xlu0 %149, %v144
    %v151 = vpop.permute.xlu0 %150
    %154 = vset.pattern.permute.xlu0 0
    %155 = vperm.xlu0 %154, %v145
    %v156 = vpop.permute.xlu0 %155
    %159 = vset.pattern.permute.xlu0 0
    %160 = vperm.xlu0 %159, %v146
    %v161 = vpop.permute.xlu0 %160
    %164 = vset.pattern.permute.xlu0 0
    %165 = vperm.xlu0 %164, %v147
    %v166 = vpop.permute.xlu0 %165
    %v168 = vmul.f32 %v130, %v151
    %v169 = vmul.f32 %v133, %v156
    %v170 = vmul.f32 %v138, %v161
    %v171 = vmul.f32 %v141, %v166
    %v172 = vld [vmem:[%s4] sm:$0xff]
    %v173 = vld [vmem:[%s4 + $0x8] sm:$0xff]
    %v174 = vld [vmem:[%s4 + $0x10] sm:$0xff]
    %v175 = vld [vmem:[%s4 + $0x18] sm:$0xff]
    %177 = vset.pattern.permute.xlu0 0
    %178 = vperm.xlu0 %177, %v172
    %v179 = vpop.permute.xlu0 %178
    %182 = vset.pattern.permute.xlu0 0
    %183 = vperm.xlu0 %182, %v173
    %v184 = vpop.permute.xlu0 %183
    %187 = vset.pattern.permute.xlu0 0
    %188 = vperm.xlu0 %187, %v174
    %v189 = vpop.permute.xlu0 %188
    %192 = vset.pattern.permute.xlu0 0
    %193 = vperm.xlu0 %192, %v175
    %v194 = vpop.permute.xlu0 %193
    %v196 = vadd.f32 %v168, %v179
    %v197 = vadd.f32 %v169, %v184
    %v198 = vadd.f32 %v170, %v189
    %v199 = vadd.f32 %v171, %v194
    %v200 = vmax.f32 %v196, 0.0
    %v201 = vmax.f32 %v197, 0.0
    %v202 = vmax.f32 %v198, 0.0
    %v203 = vmax.f32 %v199, 0.0
    %vm204 = vcmp.gt.s32.totalorder %v55, 0
    %209 = vrot.lane.b32.xlu0 %v200, 1
    %v210 = vpop.permute.xlu0 %209
    %211 = vrot.lane.b32.xlu0 %v201, 1
    %v212 = vpop.permute.xlu0 %211
    %213 = vrot.lane.b32.xlu0 %v202, 1
    %v214 = vpop.permute.xlu0 %213
    %215 = vrot.lane.b32.xlu0 %v203, 1
    %v216 = vpop.permute.xlu0 %215
    %vm221 = vcmask 7168
    %v222 = vsel %vm221, 0.0, %v210
    %v223 = vsel %vm221, 0.0, %v212
    %v224 = vsel %vm221, 0.0, %v214
    %v225 = vsel %vm221, 0.0, %v216
    %v226 = vsel %vm204, 1, 0
    %v227 = vlaneseq
    %v228 = vshrl.u32 %v227, 7
    %v229 = vsub.s32 0, %v228
    %v230 = vrot.slane %v226, %v229
    %vm231 = vcmp.eq.s32.totalorder %v230, 1
    %v232 = vsel %vm231, %v222, 0.0
    %v233 = vsel %vm231, %v223, 0.0
    %v234 = vsel %vm231, %v224, 0.0
    %v235 = vsel %vm231, %v225, 0.0
    %vm236 = vcmp.lt.s32.totalorder %v55, 15
    %237 = vrot.lane.b32.xlu0 %v200, 127
    %v238 = vpop.permute.xlu0 %237
    %239 = vrot.lane.b32.xlu0 %v201, 127
    %v240 = vpop.permute.xlu0 %239
    %241 = vrot.lane.b32.xlu0 %v202, 127
    %v242 = vpop.permute.xlu0 %241
    %243 = vrot.lane.b32.xlu0 %v203, 127
    %v244 = vpop.permute.xlu0 %243
    %vm249 = vcmask 252928
    %v250 = vsel %vm249, %v238, 0.0
    %v251 = vsel %vm249, %v240, 0.0
    %v252 = vsel %vm249, %v242, 0.0
    %v253 = vsel %vm249, %v244, 0.0
    %v254 = vsel %vm236, 1, 0
    %v255 = vlaneseq
    %v256 = vshrl.u32 %v255, 7
    %v257 = vsub.s32 0, %v256
    %v258 = vrot.slane %v254, %v257
    %vm259 = vcmp.eq.s32.totalorder %v258, 1
    %v260 = vsel %vm259, %v250, 0.0
    %v261 = vsel %vm259, %v251, 0.0
    %v262 = vsel %vm259, %v252, 0.0
    %v263 = vsel %vm259, %v253, 0.0
    %v264 = vpack.c.bf16 %v233, %v232
    %v265 = vpack.c.bf16 %v235, %v234
    %v266 = vpack.c.bf16 %v201, %v200
    %v267 = vpack.c.bf16 %v203, %v202
    %v268 = vpack.c.bf16 %v261, %v260
    %v269 = vpack.c.bf16 %v263, %v262
    %v270 = vld [vmem:[%s5] sm:$0xf]
    %v271 = vld [vmem:[%s5 + $0x4] sm:$0xf]
    %v272 = vld [vmem:[%s5 + $0x8] sm:$0xf]
    %v273 = vld [vmem:[%s5 + $0xc] sm:$0xf]
    %v278 = vunpack.c.l.b16 %v270
    %v279 = vunpack.c.l.b16 %v271
    %v280 = vunpack.c.l.b16 %v272
    %v281 = vunpack.c.l.b16 %v273
    %v282 = vpack.c.b16 %v279, %v278
    %v283 = vpack.c.b16 %v281, %v280
    %vm284 = vcmask 785408
    %v286 = vsel %vm284, %v282, 0
    %v289 = vsel %vm284, %v283, 0
    %291 = vmatprep.subr.bf16.mxu0 0
    %292 = vmatpush1.bf16.msra.mxu0 %v264
    %293 = vmatprep.subr.bf16.mxu0 0
    %294 = vmatpush1.bf16.msra.mxu0 %v265
    %295 = vmatprep.subr.bf16.mxu0 0
    %296 = vmatpush1.bf16.msra.mxu0 %v266
    %297 = vmatprep.subr.bf16.mxu0 0
    %298 = vmatpush1.bf16.msra.mxu0 %v267
    %299 = vmatprep.subr.bf16.mxu0 0
    %300 = vmatpush1.bf16.msra.mxu0 %v268
    %301 = vmatprep.subr.bf16.mxu0 0
    %302 = vmatpush1.bf16.msra.mxu0 %v269
    %303 = vmatprep.subr.bf16.mxu0 0
    %304 = vmatpush1.bf16.msra.mxu0 0
    %305 = vmatprep.subr.bf16.mxu0 0
    %306 = vmatpush1.bf16.msra.mxu0 0
    %307 = vmatprep.subr.bf16.mxu0 0
    %308 = vmatpush1.bf16.msra.mxu0 0
    %309 = vmatprep.subr.bf16.mxu0 0
    %310 = vmatpush1.bf16.msra.mxu0 0
    %311 = vmatprep.subr.bf16.mxu0 0
    %312 = vmatpush1.bf16.msra.mxu0 0
    %313 = vmatprep.subr.bf16.mxu0 0
    %314 = vmatpush1.bf16.msra.mxu0 0
    %315 = vmatprep.subr.bf16.mxu0 0
    %316 = vmatpush1.bf16.msra.mxu0 0
    %317 = vmatprep.subr.bf16.mxu0 0
    %318 = vmatpush1.bf16.msra.mxu0 0
    %319 = vmatprep.subr.bf16.mxu0 0
    %320 = vmatpush1.bf16.msra.mxu0 0
    %321 = vmatprep.subr.bf16.mxu0 0
    %322 = vmatpush1.bf16.msra.mxu0 0
    %323 = vmatprep.mubr.bf16.mxu0 0
    %324 = vmatmul.mubr.bf16.gmra.mrb[0].mxu0 %v286
    %v325 = vpop.f32.mrb[0].mxu0
    %v326 = vadd.f32 0.0, %v325
    %v327 = vpop.f32.mrb[0].mxu0
    %v328 = vpop.f32.mrb[0].mxu0
    %v329 = vadd.f32 0.0, %v328
    %v330 = vpop.f32.mrb[0].mxu0
    %331 = vmatprep.mubr.bf16.mxu0 0
    %332 = vmatmul.mubr.bf16.gmra.mrb[0].mxu0 %v289
    %v333 = vpop.f32.mrb[0].mxu0
    %v334 = vadd.f32 0.0, %v333
    %v335 = vpop.f32.mrb[0].mxu0
    %v336 = vpop.f32.mrb[0].mxu0
    %v337 = vadd.f32 0.0, %v336
    %v338 = vpop.f32.mrb[0].mxu0
    %339 = vdwg.mxu0
    %v340 = vld [vmem:[%s6] sm:$0xff]
    %v341 = vld [vmem:[%s6 + $0x8] sm:$0xff]
    %v342 = vld [vmem:[%s6 + $0x10] sm:$0xff]
    %v343 = vld [vmem:[%s6 + $0x18] sm:$0xff]
    %345 = vset.pattern.permute.xlu0 0
    %346 = vperm.xlu0 %345, %v340
    %v347 = vpop.permute.xlu0 %346
    %350 = vset.pattern.permute.xlu0 0
    %351 = vperm.xlu0 %350, %v341
    %v352 = vpop.permute.xlu0 %351
    %355 = vset.pattern.permute.xlu0 0
    %356 = vperm.xlu0 %355, %v342
    %v357 = vpop.permute.xlu0 %356
    %360 = vset.pattern.permute.xlu0 0
    %361 = vperm.xlu0 %360, %v343
    %v362 = vpop.permute.xlu0 %361
    %v364 = vmul.f32 %v326, %v347
    %v365 = vmul.f32 %v329, %v352
    %v366 = vmul.f32 %v334, %v357
    %v367 = vmul.f32 %v337, %v362
    %v368 = vld [vmem:[%s7] sm:$0xff]
    %v369 = vld [vmem:[%s7 + $0x8] sm:$0xff]
    %v370 = vld [vmem:[%s7 + $0x10] sm:$0xff]
    %v371 = vld [vmem:[%s7 + $0x18] sm:$0xff]
    %373 = vset.pattern.permute.xlu0 0
    %374 = vperm.xlu0 %373, %v368
    %v375 = vpop.permute.xlu0 %374
    %378 = vset.pattern.permute.xlu0 0
    %379 = vperm.xlu0 %378, %v369
    %v380 = vpop.permute.xlu0 %379
    %383 = vset.pattern.permute.xlu0 0
    %384 = vperm.xlu0 %383, %v370
    %v385 = vpop.permute.xlu0 %384
    %388 = vset.pattern.permute.xlu0 0
    %389 = vperm.xlu0 %388, %v371
    %v390 = vpop.permute.xlu0 %389
    %v392 = vadd.f32 %v364, %v375
    %v393 = vadd.f32 %v365, %v380
    %v394 = vadd.f32 %v366, %v385
    %v395 = vadd.f32 %v367, %v390
    %v396 = vld [vmem:[%s8] sm:$0xf]
    %v397 = vld [vmem:[%s8 + $0x4] sm:$0xf]
    %v398 = vld [vmem:[%s8 + $0x8] sm:$0xf]
    %v399 = vld [vmem:[%s8 + $0xc] sm:$0xf]
    %v404 = vunpack.c.l.b16 %v396
    %v405 = vunpack.c.l.b16 %v397
    %v406 = vunpack.c.l.b16 %v398
    %v407 = vunpack.c.l.b16 %v399
    %v408 = vpack.c.b16 %v405, %v404
    %v409 = vpack.c.b16 %v407, %v406
    %vm410 = vcmask 130048
    %v412 = vsel %vm410, %v408, 0
    %v415 = vsel %vm410, %v409, 0
    %417 = vmatprep.subr.bf16.mxu0 0
    %418 = vmatpush1.bf16.msra.mxu0 %v83
    %419 = vmatprep.subr.bf16.mxu0 0
    %420 = vmatpush1.bf16.msra.mxu0 0
    %421 = vmatprep.subr.bf16.mxu0 0
    %422 = vmatpush1.bf16.msra.mxu0 0
    %423 = vmatprep.subr.bf16.mxu0 0
    %424 = vmatpush1.bf16.msra.mxu0 0
    %425 = vmatprep.subr.bf16.mxu0 0
    %426 = vmatpush1.bf16.msra.mxu0 0
    %427 = vmatprep.subr.bf16.mxu0 0
    %428 = vmatpush1.bf16.msra.mxu0 0
    %429 = vmatprep.subr.bf16.mxu0 0
    %430 = vmatpush1.bf16.msra.mxu0 0
    %431 = vmatprep.subr.bf16.mxu0 0
    %432 = vmatpush1.bf16.msra.mxu0 0
    %433 = vmatprep.subr.bf16.mxu0 0
    %434 = vmatpush1.bf16.msra.mxu0 0
    %435 = vmatprep.subr.bf16.mxu0 0
    %436 = vmatpush1.bf16.msra.mxu0 0
    %437 = vmatprep.subr.bf16.mxu0 0
    %438 = vmatpush1.bf16.msra.mxu0 0
    %439 = vmatprep.subr.bf16.mxu0 0
    %440 = vmatpush1.bf16.msra.mxu0 0
    %441 = vmatprep.subr.bf16.mxu0 0
    %442 = vmatpush1.bf16.msra.mxu0 0
    %443 = vmatprep.subr.bf16.mxu0 0
    %444 = vmatpush1.bf16.msra.mxu0 0
    %445 = vmatprep.subr.bf16.mxu0 0
    %446 = vmatpush1.bf16.msra.mxu0 0
    %447 = vmatprep.subr.bf16.mxu0 0
    %448 = vmatpush1.bf16.msra.mxu0 0
    %449 = vmatprep.mubr.bf16.mxu0 0
    %450 = vmatmul.mubr.bf16.gmra.mrb[0].mxu0 %v412
    %v451 = vpop.f32.mrb[0].mxu0
    %v452 = vadd.f32 0.0, %v451
    %v453 = vpop.f32.mrb[0].mxu0
    %v454 = vpop.f32.mrb[0].mxu0
    %v455 = vadd.f32 0.0, %v454
    %v456 = vpop.f32.mrb[0].mxu0
    %457 = vmatprep.mubr.bf16.mxu0 0
    %458 = vmatmul.mubr.bf16.gmra.mrb[0].mxu0 %v415
    %v459 = vpop.f32.mrb[0].mxu0
    %v460 = vadd.f32 0.0, %v459
    %v461 = vpop.f32.mrb[0].mxu0
    %v462 = vpop.f32.mrb[0].mxu0
    %v463 = vadd.f32 0.0, %v462
    %v464 = vpop.f32.mrb[0].mxu0
    %465 = vdwg.mxu0
    %v466 = vld [vmem:[%s9] sm:$0xff]
    %v467 = vld [vmem:[%s9 + $0x8] sm:$0xff]
    %v468 = vld [vmem:[%s9 + $0x10] sm:$0xff]
    %v469 = vld [vmem:[%s9 + $0x18] sm:$0xff]
    %471 = vset.pattern.permute.xlu0 0
    %472 = vperm.xlu0 %471, %v466
    %v473 = vpop.permute.xlu0 %472
    %476 = vset.pattern.permute.xlu0 0
    %477 = vperm.xlu0 %476, %v467
    %v478 = vpop.permute.xlu0 %477
    %481 = vset.pattern.permute.xlu0 0
    %482 = vperm.xlu0 %481, %v468
    %v483 = vpop.permute.xlu0 %482
    %486 = vset.pattern.permute.xlu0 0
    %487 = vperm.xlu0 %486, %v469
    %v488 = vpop.permute.xlu0 %487
    %v490 = vmul.f32 %v452, %v473
    %v491 = vmul.f32 %v455, %v478
    %v492 = vmul.f32 %v460, %v483
    %v493 = vmul.f32 %v463, %v488
    %v494 = vld [vmem:[%s10] sm:$0xff]
    %v495 = vld [vmem:[%s10 + $0x8] sm:$0xff]
    %v496 = vld [vmem:[%s10 + $0x10] sm:$0xff]
    %v497 = vld [vmem:[%s10 + $0x18] sm:$0xff]
    %499 = vset.pattern.permute.xlu0 0
    %500 = vperm.xlu0 %499, %v494
    %v501 = vpop.permute.xlu0 %500
    %504 = vset.pattern.permute.xlu0 0
    %505 = vperm.xlu0 %504, %v495
    %v506 = vpop.permute.xlu0 %505
    %509 = vset.pattern.permute.xlu0 0
    %510 = vperm.xlu0 %509, %v496
    %v511 = vpop.permute.xlu0 %510
    %514 = vset.pattern.permute.xlu0 0
    %515 = vperm.xlu0 %514, %v497
    %v516 = vpop.permute.xlu0 %515
    %v518 = vadd.f32 %v490, %v501
    %v519 = vadd.f32 %v491, %v506
    %v520 = vadd.f32 %v492, %v511
    %v521 = vadd.f32 %v493, %v516
    %v522 = vadd.f32 %v392, %v518
    %v523 = vadd.f32 %v393, %v519
    %v524 = vadd.f32 %v394, %v520
    %v525 = vadd.f32 %v395, %v521
    %v526 = vmax.f32 %v522, 0.0
    %v527 = vmax.f32 %v523, 0.0
    %v528 = vmax.f32 %v524, 0.0
    %v529 = vmax.f32 %v525, 0.0
    %vm530 = vcmp.eq.s32.totalorder %v55, 0
    %v531 = vsel %vm530, 1, 0
    %v532 = vlaneseq
    %v533 = vshrl.u32 %v532, 7
    %v534 = vsub.s32 1, %v533
    %v535 = vrot.slane %v531, %v534
    %vm536 = vcmp.eq.s32.totalorder %v535, 1
    %v537 = vsel %vm536, %v526, 0.0
    %v538 = vsel %vm536, %v527, 0.0
    %v539 = vsel %vm536, %v528, 0.0
    %v540 = vsel %vm536, %v529, 0.0
    %vm541 = vcmask 261120
    %v542 = vsel %vm541, %v537, 0.0
    %543 = vadd.xlane.f32.xlu0 %v542
    %v544 = vpop.xlane.xlu0 %543
    %v545 = vsel %vm541, %v538, 0.0
    %546 = vadd.xlane.f32.xlu0 %v545
    %v547 = vpop.xlane.xlu0 %546
    %v548 = vsel %vm541, %v539, 0.0
    %549 = vadd.xlane.f32.xlu0 %v548
    %v550 = vpop.xlane.xlu0 %549
    %v551 = vsel %vm541, %v540, 0.0
    %552 = vadd.xlane.f32.xlu0 %v551
    %v553 = vpop.xlane.xlu0 %552
    %v554 = vmul.f32 %v544, 0.0625
    %v555 = vmul.f32 %v547, 0.0625
    %v556 = vmul.f32 %v550, 0.0625
    %v557 = vmul.f32 %v553, 0.0625
    %v558 = vsel %vm541, %v537, -inf
    %559 = vmax.xlane.f32.xlu0 %v558
    %v560 = vpop.xlane.xlu0 %559
    %v561 = vsel %vm541, %v538, -inf
    %562 = vmax.xlane.f32.xlu0 %v561
    %v563 = vpop.xlane.xlu0 %562
    %v564 = vsel %vm541, %v539, -inf
    %565 = vmax.xlane.f32.xlu0 %v564
    %v566 = vpop.xlane.xlu0 %565
    %v567 = vsel %vm541, %v540, -inf
    %568 = vmax.xlane.f32.xlu0 %v567
    %v569 = vpop.xlane.xlu0 %568
    %v570 = vsel %vm536, %v554, 0.0
    %v571 = vsel %vm536, %v555, 0.0
    %v572 = vsel %vm536, %v556, 0.0
    %v573 = vsel %vm536, %v557, 0.0
    %v574 = vsel %vm536, %v560, 0.0
    %v575 = vsel %vm536, %v563, 0.0
    %v576 = vsel %vm536, %v566, 0.0
    %v577 = vsel %vm536, %v569, 0.0
    %vm578 = vcmp.eq.s32.totalorder %v55, 1
    %v579 = vsel %vm578, 1, 0
    %v580 = vlaneseq
    %v581 = vshrl.u32 %v580, 7
    %v582 = vsub.s32 1, %v581
    %v583 = vrot.slane %v579, %v582
    %vm584 = vcmp.eq.s32.totalorder %v583, 1
    %v585 = vsel %vm584, %v526, 0.0
    %v586 = vsel %vm584, %v527, 0.0
    %v587 = vsel %vm584, %v528, 0.0
    %v588 = vsel %vm584, %v529, 0.0
    %v589 = vsel %vm541, %v585, 0.0
    %590 = vadd.xlane.f32.xlu0 %v589
    %v591 = vpop.xlane.xlu0 %590
    %v592 = vsel %vm541, %v586, 0.0
    %593 = vadd.xlane.f32.xlu0 %v592
    %v594 = vpop.xlane.xlu0 %593
    %v595 = vsel %vm541, %v587, 0.0
    %596 = vadd.xlane.f32.xlu0 %v595
    %v597 = vpop.xlane.xlu0 %596
    %v598 = vsel %vm541, %v588, 0.0
    %599 = vadd.xlane.f32.xlu0 %v598
    %v600 = vpop.xlane.xlu0 %599
    %v601 = vmul.f32 %v591, 0.0625
    %v602 = vmul.f32 %v594, 0.0625
    %v603 = vmul.f32 %v597, 0.0625
    %v604 = vmul.f32 %v600, 0.0625
    %v605 = vsel %vm541, %v585, -inf
    %606 = vmax.xlane.f32.xlu0 %v605
    %v607 = vpop.xlane.xlu0 %606
    %v608 = vsel %vm541, %v586, -inf
    %609 = vmax.xlane.f32.xlu0 %v608
    %v610 = vpop.xlane.xlu0 %609
    %v611 = vsel %vm541, %v587, -inf
    %612 = vmax.xlane.f32.xlu0 %v611
    %v613 = vpop.xlane.xlu0 %612
    %v614 = vsel %vm541, %v588, -inf
    %615 = vmax.xlane.f32.xlu0 %v614
    %v616 = vpop.xlane.xlu0 %615
    %v617 = vsel %vm584, %v601, %v570
    %v618 = vsel %vm584, %v602, %v571
    %v619 = vsel %vm584, %v603, %v572
    %v620 = vsel %vm584, %v604, %v573
    %v621 = vsel %vm584, %v607, %v574
    %v622 = vsel %vm584, %v610, %v575
    %v623 = vsel %vm584, %v613, %v576
    %v624 = vsel %vm584, %v616, %v577
    %v625 = vld [vmem:[%s11] sm:$0x1]
    %v626 = vpack.c.bf16 %v618, %v617
    %v627 = vpack.c.bf16 %v620, %v619
    %v629 = vsel %vm541, %v625, 0
    %631 = vmatprep.subr.bf16.mxu0 0
    %632 = vmatpush1.bf16.msra.mxu0 %v626
    %633 = vmatprep.subr.bf16.mxu0 0
    %634 = vmatpush1.bf16.msra.mxu0 %v627
    %635 = vmatprep.subr.bf16.mxu0 0
    %636 = vmatpush1.bf16.msra.mxu0 0
    %637 = vmatprep.subr.bf16.mxu0 0
    %638 = vmatpush1.bf16.msra.mxu0 0
    %639 = vmatprep.subr.bf16.mxu0 0
    %640 = vmatpush1.bf16.msra.mxu0 0
    %641 = vmatprep.subr.bf16.mxu0 0
    %642 = vmatpush1.bf16.msra.mxu0 0
    %643 = vmatprep.subr.bf16.mxu0 0
    %644 = vmatpush1.bf16.msra.mxu0 0
    %645 = vmatprep.subr.bf16.mxu0 0
    %646 = vmatpush1.bf16.msra.mxu0 0
    %647 = vmatprep.subr.bf16.mxu0 0
    %648 = vmatpush1.bf16.msra.mxu0 0
    %649 = vmatprep.subr.bf16.mxu0 0
    %650 = vmatpush1.bf16.msra.mxu0 0
    %651 = vmatprep.subr.bf16.mxu0 0
    %652 = vmatpush1.bf16.msra.mxu0 0
    %653 = vmatprep.subr.bf16.mxu0 0
    %654 = vmatpush1.bf16.msra.mxu0 0
    %655 = vmatprep.subr.bf16.mxu0 0
    %656 = vmatpush1.bf16.msra.mxu0 0
    %657 = vmatprep.subr.bf16.mxu0 0
    %658 = vmatpush1.bf16.msra.mxu0 0
    %659 = vmatprep.subr.bf16.mxu0 0
    %660 = vmatpush1.bf16.msra.mxu0 0
    %661 = vmatprep.subr.bf16.mxu0 0
    %662 = vmatpush1.bf16.msra.mxu0 0
    %663 = vmatprep.mubr.bf16.mxu0 0
    %664 = vmatmul.mubr.bf16.gmra.mrb[0].mxu0 %v629
    %v665 = vpop.f32.mrb[0].mxu0
    %v666 = vadd.f32 0.0, %v665
    %v667 = vpop.f32.mrb[0].mxu0
    %v668 = vpop.f32.mrb[0].mxu0
    %v669 = vpop.f32.mrb[0].mxu0
    %670 = vdwg.mxu0
    %v671 = vmax.f32 %v666, 0.0
    %v672 = vld [vmem:[%s12] sm:$0xf]
    %v673 = vld [vmem:[%s12 + $0x4] sm:$0xf]
    %v674 = vld [vmem:[%s12 + $0x8] sm:$0xf]
    %v675 = vld [vmem:[%s12 + $0xc] sm:$0xf]
    %v676 = vpack.c.bf16 %v671, %v671
    %v677 = vpack.c.bf16 %v622, %v621
    %v678 = vpack.c.bf16 %v624, %v623
    %679 = vmatprep.subr.bf16.mxu0 0
    %680 = vmatpush1.bf16.msra.mxu0 %v677
    %681 = vmatprep.subr.bf16.mxu0 0
    %682 = vmatpush1.bf16.msra.mxu0 %v678
    %683 = vmatprep.subr.bf16.mxu0 0
    %684 = vmatpush1.bf16.msra.mxu0 0
    %685 = vmatprep.subr.bf16.mxu0 0
    %686 = vmatpush1.bf16.msra.mxu0 0
    %687 = vmatprep.subr.bf16.mxu0 0
    %688 = vmatpush1.bf16.msra.mxu0 0
    %689 = vmatprep.subr.bf16.mxu0 0
    %690 = vmatpush1.bf16.msra.mxu0 0
    %691 = vmatprep.subr.bf16.mxu0 0
    %692 = vmatpush1.bf16.msra.mxu0 0
    %693 = vmatprep.subr.bf16.mxu0 0
    %694 = vmatpush1.bf16.msra.mxu0 0
    %695 = vmatprep.subr.bf16.mxu0 0
    %696 = vmatpush1.bf16.msra.mxu0 0
    %697 = vmatprep.subr.bf16.mxu0 0
    %698 = vmatpush1.bf16.msra.mxu0 0
    %699 = vmatprep.subr.bf16.mxu0 0
    %700 = vmatpush1.bf16.msra.mxu0 0
    %701 = vmatprep.subr.bf16.mxu0 0
    %702 = vmatpush1.bf16.msra.mxu0 0
    %703 = vmatprep.subr.bf16.mxu0 0
    %704 = vmatpush1.bf16.msra.mxu0 0
    %705 = vmatprep.subr.bf16.mxu0 0
    %706 = vmatpush1.bf16.msra.mxu0 0
    %707 = vmatprep.subr.bf16.mxu0 0
    %708 = vmatpush1.bf16.msra.mxu0 0
    %709 = vmatprep.subr.bf16.mxu0 0
    %710 = vmatpush1.bf16.msra.mxu0 0
    %711 = vmatprep.mubr.bf16.mxu0 0
    %712 = vmatmul.mubr.bf16.gmra.mrb[0].mxu0 %v629
    %v713 = vpop.f32.mrb[0].mxu0
    %v714 = vadd.f32 0.0, %v713
    %v715 = vpop.f32.mrb[0].mxu0
    %v716 = vpop.f32.mrb[0].mxu0
    %v717 = vpop.f32.mrb[0].mxu0
    %718 = vdwg.mxu0
    %v719 = vmax.f32 %v714, 0.0
    %v720 = vpack.c.bf16 %v719, %v719
    %v725 = vunpack.c.l.b16 %v672
    %v726 = vunpack.c.l.b16 %v673
    %v727 = vunpack.c.l.b16 %v674
    %v728 = vunpack.c.l.b16 %v675
    %v729 = vpack.c.b16 %v726, %v725
    %v730 = vpack.c.b16 %v728, %v727
    %vm731 = vcmask 15360
    %v733 = vsel %vm731, %v729, 0
    %v736 = vsel %vm731, %v730, 0
    %vm738 = vcmask 1040384
    %v740 = vsel %vm738, %v720, 0
    %742 = vmatprep.subr.bf16.mxu0 0
    %743 = vmatpush1.bf16.msra.mxu0 %v740
    %744 = vmatprep.subr.bf16.mxu0 0
    %745 = vmatpush1.bf16.msra.mxu0 0
    %746 = vmatprep.subr.bf16.mxu0 0
    %747 = vmatpush1.bf16.msra.mxu0 0
    %748 = vmatprep.subr.bf16.mxu0 0
    %749 = vmatpush1.bf16.msra.mxu0 0
    %750 = vmatprep.subr.bf16.mxu0 0
    %751 = vmatpush1.bf16.msra.mxu0 0
    %752 = vmatprep.subr.bf16.mxu0 0
    %753 = vmatpush1.bf16.msra.mxu0 0
    %754 = vmatprep.subr.bf16.mxu0 0
    %755 = vmatpush1.bf16.msra.mxu0 0
    %756 = vmatprep.subr.bf16.mxu0 0
    %757 = vmatpush1.bf16.msra.mxu0 0
    %758 = vmatprep.subr.bf16.mxu0 0
    %759 = vmatpush1.bf16.msra.mxu0 0
    %760 = vmatprep.subr.bf16.mxu0 0
    %761 = vmatpush1.bf16.msra.mxu0 0
    %762 = vmatprep.subr.bf16.mxu0 0
    %763 = vmatpush1.bf16.msra.mxu0 0
    %764 = vmatprep.subr.bf16.mxu0 0
    %765 = vmatpush1.bf16.msra.mxu0 0
    %766 = vmatprep.subr.bf16.mxu0 0
    %767 = vmatpush1.bf16.msra.mxu0 0
    %768 = vmatprep.subr.bf16.mxu0 0
    %769 = vmatpush1.bf16.msra.mxu0 0
    %770 = vmatprep.subr.bf16.mxu0 0
    %771 = vmatpush1.bf16.msra.mxu0 0
    %772 = vmatprep.subr.bf16.mxu0 0
    %773 = vmatpush1.bf16.msra.mxu0 0
    %774 = vmatprep.mubr.bf16.mxu0 0
    %775 = vmatmul.mubr.bf16.gmra.mrb[0].mxu0 %v733
    %v776 = vpop.f32.mrb[0].mxu0
    %v777 = vadd.f32 0.0, %v776
    %v778 = vpop.f32.mrb[0].mxu0
    %v779 = vpop.f32.mrb[0].mxu0
    %v780 = vadd.f32 0.0, %v779
    %v781 = vpop.f32.mrb[0].mxu0
    %782 = vmatprep.mubr.bf16.mxu0 0
    %783 = vmatmul.mubr.bf16.gmra.mrb[0].mxu0 %v736
    %v784 = vpop.f32.mrb[0].mxu0
    %v785 = vadd.f32 0.0, %v784
    %v786 = vpop.f32.mrb[0].mxu0
    %v787 = vpop.f32.mrb[0].mxu0
    %v788 = vadd.f32 0.0, %v787
    %v789 = vpop.f32.mrb[0].mxu0
    %790 = vdwg.mxu0
    %v792 = vsel %vm738, %v676, 0
    %794 = vmatprep.subr.bf16.mxu0 0
    %795 = vmatpush1.bf16.msra.mxu0 %v792
    %796 = vmatprep.subr.bf16.mxu0 0
    %797 = vmatpush1.bf16.msra.mxu0 0
    %798 = vmatprep.subr.bf16.mxu0 0
    %799 = vmatpush1.bf16.msra.mxu0 0
    %800 = vmatprep.subr.bf16.mxu0 0
    %801 = vmatpush1.bf16.msra.mxu0 0
    %802 = vmatprep.subr.bf16.mxu0 0
    %803 = vmatpush1.bf16.msra.mxu0 0
    %804 = vmatprep.subr.bf16.mxu0 0
    %805 = vmatpush1.bf16.msra.mxu0 0
    %806 = vmatprep.subr.bf16.mxu0 0
    %807 = vmatpush1.bf16.msra.mxu0 0
    %808 = vmatprep.subr.bf16.mxu0 0
    %809 = vmatpush1.bf16.msra.mxu0 0
    %810 = vmatprep.subr.bf16.mxu0 0
    %811 = vmatpush1.bf16.msra.mxu0 0
    %812 = vmatprep.subr.bf16.mxu0 0
    %813 = vmatpush1.bf16.msra.mxu0 0
    %814 = vmatprep.subr.bf16.mxu0 0
    %815 = vmatpush1.bf16.msra.mxu0 0
    %816 = vmatprep.subr.bf16.mxu0 0
    %817 = vmatpush1.bf16.msra.mxu0 0
    %818 = vmatprep.subr.bf16.mxu0 0
    %819 = vmatpush1.bf16.msra.mxu0 0
    %820 = vmatprep.subr.bf16.mxu0 0
    %821 = vmatpush1.bf16.msra.mxu0 0
    %822 = vmatprep.subr.bf16.mxu0 0
    %823 = vmatpush1.bf16.msra.mxu0 0
    %824 = vmatprep.subr.bf16.mxu0 0
    %825 = vmatpush1.bf16.msra.mxu0 0
    %826 = vmatprep.mubr.bf16.mxu0 0
    %827 = vmatmul.mubr.bf16.gmra.mrb[0].mxu0 %v733
    %v828 = vpop.f32.mrb[0].mxu0
    %v829 = vadd.f32 %v777, %v828
    %v830 = vpop.f32.mrb[0].mxu0
    %v831 = vpop.f32.mrb[0].mxu0
    %v832 = vadd.f32 %v780, %v831
    %v833 = vpop.f32.mrb[0].mxu0
    %834 = vmatprep.mubr.bf16.mxu0 0
    %835 = vmatmul.mubr.bf16.gmra.mrb[0].mxu0 %v736
    %v836 = vpop.f32.mrb[0].mxu0
    %v837 = vadd.f32 %v785, %v836
    %v838 = vpop.f32.mrb[0].mxu0
    %v839 = vpop.f32.mrb[0].mxu0
    %v840 = vadd.f32 %v788, %v839
    %v841 = vpop.f32.mrb[0].mxu0
    %842 = vdwg.mxu0
    %v843 = vxor.u32 %v829, 2147483648
    %v844 = vxor.u32 %v832, 2147483648
    %v845 = vxor.u32 %v837, 2147483648
    %v846 = vxor.u32 %v840, 2147483648
    %v847 = vmul.f32 %v843, 1.442695
    %v848 = vpow.pop %v847
    %v849 = vmul.f32 %v844, 1.442695
    %v850 = vpow.pop %v849
    %v851 = vmul.f32 %v845, 1.442695
    %v852 = vpow.pop %v851
    %v853 = vmul.f32 %v846, 1.442695
    %v854 = vpow.pop %v853
    %v855 = vadd.f32 %v848, 1.0
    %v856 = vadd.f32 %v850, 1.0
    %v857 = vadd.f32 %v852, 1.0
    %v858 = vadd.f32 %v854, 1.0
    %v859 = vrcp.pop %v855
    %v860 = vmul.f32 1.0, %v859
    %v861 = vrcp.pop %v856
    %v862 = vmul.f32 1.0, %v861
    %v863 = vrcp.pop %v857
    %v864 = vmul.f32 1.0, %v863
    %v865 = vrcp.pop %v858
    %v866 = vmul.f32 1.0, %v865
    %v867 = vmul.f32 %v526, %v860
    %v868 = vmul.f32 %v527, %v862
    %v869 = vmul.f32 %v528, %v864
    %v870 = vmul.f32 %v529, %v866
    %v871 = vsel %vm541, %v867, 0.0
    %v872 = vsel %vm541, %v868, 0.0
    %v873 = vadd.f32 %v871, %v872
    %v874 = vsel %vm541, %v869, 0.0
    %v875 = vadd.f32 %v873, %v874
    %v876 = vsel %vm541, %v870, 0.0
    %v877 = vadd.f32 %v875, %v876
    %v878 = vrot.slane %v877, 4
    %v879 = vadd.f32 %v877, %v878
    %v880 = vrot.slane %v879, 2
    %v881 = vadd.f32 %v879, %v880
    %v882 = vrot.slane %v881, 1
    %v883 = vadd.f32 %v881, %v882
    %v884 = vrcp.pop 32.0
    %v885 = vmul.f32 %v883, %v884
    %v886 = vsel %vm541, %v867, -inf
    %v887 = vsel %vm541, %v868, -inf
    %v888 = vsel %vm541, %v869, -inf
    %v889 = vsel %vm541, %v870, -inf
    %v890 = vmax.f32 %v886, %v887
    %v891 = vmax.f32 %v888, %v889
    %v892 = vmax.f32 %v890, %v891
    %v893 = vrot.slane %v892, 4
    %v894 = vmax.f32 %v892, %v893
    %v895 = vrot.slane %v894, 2
    %v896 = vmax.f32 %v894, %v895
    %v897 = vrot.slane %v896, 1
    %v898 = vmax.f32 %v896, %v897
    %v899 = vsel %vm738, %v885, %v898
    %v900 = vld [vmem:[%s13] sm:$0x3]
    %902 = vrot.lane.b32.xlu0 %v899, 3
    %v903 = vpop.permute.xlu0 %902
    %vm905 = vcmask 23552
    %v906 = vsel %vm905, 0.0, %v903
    %v907 = vadd.s32 %v55, 4294967293
    %vm908 = vcmp.ge.s32.totalorder %v907, 0
    %vm909 = vcmp.lt.s32.totalorder %v907, 16
    %vm910 = vmand %vm908, %vm909
    %v911 = vsel %vm910, 1, 0
    %v912 = vlaneseq
    %v913 = vshrl.u32 %v912, 7
    %v914 = vsub.s32 0, %v913
    %v915 = vrot.slane %v911, %v914
    %vm916 = vcmp.eq.s32.totalorder %v915, 1
    %v917 = vsel %vm916, %v906, 0.0
    %919 = vset.pattern.permute.xlu0 0
    %920 = vperm.xlu0 %919, %v900
    %v921 = vpop.permute.xlu0 %920
    %v923 = vmul.f32 %v917, %v921
    %vm924 = vcmask 254976
    %v925 = vsel %vm924, %v923, 0.0
    %v926 = vrot.slane %v925, 4
    %v927 = vadd.f32 %v925, %v926
    %v928 = vrot.slane %v927, 2
    %v929 = vadd.f32 %v927, %v928
    %v930 = vrot.slane %v929, 1
    %v931 = vadd.f32 %v929, %v930
    %v932 = vadd.f32 %v931, 0.0
    %933 = vrot.lane.b32.xlu0 %v899, 2
    %v934 = vpop.permute.xlu0 %933
    %v936 = vsel %vm731, 0.0, %v934
    %v937 = vadd.s32 %v55, 4294967294
    %vm938 = vcmp.ge.s32.totalorder %v937, 0
    %vm939 = vcmp.lt.s32.totalorder %v937, 16
    %vm940 = vmand %vm938, %vm939
    %v941 = vsel %vm940, 1, 0
    %v942 = vlaneseq
    %v943 = vshrl.u32 %v942, 7
    %v944 = vsub.s32 0, %v943
    %v945 = vrot.slane %v941, %v944
    %vm946 = vcmp.eq.s32.totalorder %v945, 1
    %v947 = vsel %vm946, %v936, 0.0
    %948 = vset.pattern.permute.xlu0 1
    %949 = vperm.xlu0 %948, %v900
    %v950 = vpop.permute.xlu0 %949
    %v952 = vmul.f32 %v947, %v950
    %v953 = vsel %vm924, %v952, 0.0
    %v954 = vrot.slane %v953, 4
    %v955 = vadd.f32 %v953, %v954
    %v956 = vrot.slane %v955, 2
    %v957 = vadd.f32 %v955, %v956
    %v958 = vrot.slane %v957, 1
    %v959 = vadd.f32 %v957, %v958
    %v960 = vadd.f32 %v932, %v959
    %961 = vrot.lane.b32.xlu0 %v899, 1
    %v962 = vpop.permute.xlu0 %961
    %v964 = vsel %vm221, 0.0, %v962
    %v965 = vadd.s32 %v55, 4294967295
    %vm966 = vcmp.ge.s32.totalorder %v965, 0
    %vm967 = vcmp.lt.s32.totalorder %v965, 16
    %vm968 = vmand %vm966, %vm967
    %v969 = vsel %vm968, 1, 0
    %v970 = vlaneseq
    %v971 = vshrl.u32 %v970, 7
    %v972 = vsub.s32 0, %v971
    %v973 = vrot.slane %v969, %v972
    %vm974 = vcmp.eq.s32.totalorder %v973, 1
    %v975 = vsel %vm974, %v964, 0.0
    %976 = vset.pattern.permute.xlu0 2
    %977 = vperm.xlu0 %976, %v900
    %v978 = vpop.permute.xlu0 %977
    %v980 = vmul.f32 %v975, %v978
    %v981 = vsel %vm924, %v980, 0.0
    %v982 = vrot.slane %v981, 4
    %v983 = vadd.f32 %v981, %v982
    %v984 = vrot.slane %v983, 2
    %v985 = vadd.f32 %v983, %v984
    %v986 = vrot.slane %v985, 1
    %v987 = vadd.f32 %v985, %v986
    %v988 = vadd.f32 %v960, %v987
    %vm989 = vcmp.ge.s32.totalorder %v55, 0
    %vm990 = vcmp.lt.s32.totalorder %v55, 16
    %vm991 = vmand %vm989, %vm990
    %v992 = vsel %vm991, 1, 0
    %v993 = vlaneseq
    %v994 = vshrl.u32 %v993, 7
    %v995 = vsub.s32 0, %v994
    %v996 = vrot.slane %v992, %v995
    %vm997 = vcmp.eq.s32.totalorder %v996, 1
    %v998 = vsel %vm997, %v899, 0.0
    %999 = vset.pattern.permute.xlu0 3
    %1000 = vperm.xlu0 %999, %v900
    %v1001 = vpop.permute.xlu0 %1000
    %v1003 = vmul.f32 %v998, %v1001
    %v1004 = vsel %vm924, %v1003, 0.0
    %v1005 = vrot.slane %v1004, 4
    %v1006 = vadd.f32 %v1004, %v1005
    %v1007 = vrot.slane %v1006, 2
    %v1008 = vadd.f32 %v1006, %v1007
    %v1009 = vrot.slane %v1008, 1
    %v1010 = vadd.f32 %v1008, %v1009
    %v1011 = vadd.f32 %v988, %v1010
    %1012 = vrot.lane.b32.xlu0 %v899, 127
    %v1013 = vpop.permute.xlu0 %1012
    %v1015 = vsel %vm249, %v1013, 0.0
    %v1016 = vadd.s32 %v55, 1
    %vm1017 = vcmp.ge.s32.totalorder %v1016, 0
    %vm1018 = vcmp.lt.s32.totalorder %v1016, 16
    %vm1019 = vmand %vm1017, %vm1018
    %v1020 = vsel %vm1019, 1, 0
    %v1021 = vlaneseq
    %v1022 = vshrl.u32 %v1021, 7
    %v1023 = vsub.s32 0, %v1022
    %v1024 = vrot.slane %v1020, %v1023
    %vm1025 = vcmp.eq.s32.totalorder %v1024, 1
    %v1026 = vsel %vm1025, %v1015, 0.0
    %1027 = vset.pattern.permute.xlu0 4
    %1028 = vperm.xlu0 %1027, %v900
    %v1029 = vpop.permute.xlu0 %1028
    %v1031 = vmul.f32 %v1026, %v1029
    %v1032 = vsel %vm924, %v1031, 0.0
    %v1033 = vrot.slane %v1032, 4
    %v1034 = vadd.f32 %v1032, %v1033
    %v1035 = vrot.slane %v1034, 2
    %v1036 = vadd.f32 %v1034, %v1035
    %v1037 = vrot.slane %v1036, 1
    %v1038 = vadd.f32 %v1036, %v1037
    %v1039 = vadd.f32 %v1011, %v1038
    %1040 = vrot.lane.b32.xlu0 %v899, 126
    %v1041 = vpop.permute.xlu0 %1040
    %vm1043 = vcmask 244736
    %v1044 = vsel %vm1043, %v1041, 0.0
    %v1045 = vadd.s32 %v55, 2
    %vm1046 = vcmp.ge.s32.totalorder %v1045, 0
    %vm1047 = vcmp.lt.s32.totalorder %v1045, 16
    %vm1048 = vmand %vm1046, %vm1047
    %v1049 = vsel %vm1048, 1, 0
    %v1050 = vlaneseq
    %v1051 = vshrl.u32 %v1050, 7
    %v1052 = vsub.s32 0, %v1051
    %v1053 = vrot.slane %v1049, %v1052
    %vm1054 = vcmp.eq.s32.totalorder %v1053, 1
    %v1055 = vsel %vm1054, %v1044, 0.0
    %1056 = vset.pattern.permute.xlu0 5
    %1057 = vperm.xlu0 %1056, %v900
    %v1058 = vpop.permute.xlu0 %1057
    %v1060 = vmul.f32 %v1055, %v1058
    %v1061 = vsel %vm924, %v1060, 0.0
    %v1062 = vrot.slane %v1061, 4
    %v1063 = vadd.f32 %v1061, %v1062
    %v1064 = vrot.slane %v1063, 2
    %v1065 = vadd.f32 %v1063, %v1064
    %v1066 = vrot.slane %v1065, 1
    %v1067 = vadd.f32 %v1065, %v1066
    %v1068 = vadd.f32 %v1039, %v1067
    %1069 = vrot.lane.b32.xlu0 %v899, 125
    %v1070 = vpop.permute.xlu0 %1069
    %vm1072 = vcmask 236544
    %v1073 = vsel %vm1072, %v1070, 0.0
    %v1074 = vadd.s32 %v55, 3
    %vm1075 = vcmp.ge.s32.totalorder %v1074, 0
    %vm1076 = vcmp.lt.s32.totalorder %v1074, 16
    %vm1077 = vmand %vm1075, %vm1076
    %v1078 = vsel %vm1077, 1, 0
    %v1079 = vlaneseq
    %v1080 = vshrl.u32 %v1079, 7
    %v1081 = vsub.s32 0, %v1080
    %v1082 = vrot.slane %v1078, %v1081
    %vm1083 = vcmp.eq.s32.totalorder %v1082, 1
    %v1084 = vsel %vm1083, %v1073, 0.0
    %1085 = vset.pattern.permute.xlu0 6
    %1086 = vperm.xlu0 %1085, %v900
    %v1087 = vpop.permute.xlu0 %1086
    %v1089 = vmul.f32 %v1084, %v1087
    %v1090 = vsel %vm924, %v1089, 0.0
    %v1091 = vrot.slane %v1090, 4
    %v1092 = vadd.f32 %v1090, %v1091
    %v1093 = vrot.slane %v1092, 2
    %v1094 = vadd.f32 %v1092, %v1093
    %v1095 = vrot.slane %v1094, 1
    %v1096 = vadd.f32 %v1094, %v1095
    %v1097 = vadd.f32 %v1068, %v1096
    %v1098 = vxor.u32 %v1097, 2147483648
    %v1099 = vmul.f32 %v1098, 1.442695
    %v1100 = vpow.pop %v1099
    %v1101 = vadd.f32 %v1100, 1.0
    %v1102 = vrcp.pop %v1101
    %v1103 = vmul.f32 1.0, %v1102
    %v1104 = vmul.f32 %v867, %v1103
    %v1105 = vmul.f32 %v868, %v1103
    %v1106 = vmul.f32 %v869, %v1103
    %v1107 = vmul.f32 %v870, %v1103
    %1108 = vst.msk [vmem:[#allocation2] sm:$0xff] %vm541, %v1104
    %1109 = vst.msk [vmem:[#allocation2 + $0x8] sm:$0xff] %vm541, %v1105
    %1110 = vst.msk [vmem:[#allocation2 + $0x10] sm:$0xff] %vm541, %v1106
    %1111 = vst.msk [vmem:[#allocation2 + $0x18] sm:$0xff] %vm541, %v1107
    // Predicated region
    $region58: #{tpu_custom_call.1} parent=1 // pred_check
      _
    $region59: #{tpu_custom_call.1} parent=1 // pred_check_branch
      %1113 = sbr.rel (0) target = $region61
    $region60: #{tpu_custom_call.1} parent=1 // pred_region
      %s1115 = ssub.s32 512, 512
      %1116 = vsyncadd [#allocation3], %s1115
      %s1117 = sshll.u32 [#allocation2], 4
      %s1118 = int_to_ptr.vmem [resolvable:$true] %s1117
      %1123 = dma.vmem_to_hbm [thread:$0]  %s1118, 512, %s14, [#allocation3], 128, 128, 8
    $region61: #{tpu_custom_call.1} parent=1 // pred_fallthru
      _
    // Predicated region
    $region62: #{tpu_custom_call.1} parent=1 // pred_check
      _
    $region63: #{tpu_custom_call.1} parent=1 // pred_check_branch
      %1125 = sbr.rel (0) target = $region65
    $region64: #{tpu_custom_call.1} parent=1 // pred_region
      %1126 = dma.done [#allocation3], 512
    $region65: #{tpu_custom_call.1} parent=1 // pred_fallthru
      _
    %1127 = vsyncpa [#allocation3], 1

</llo_original>
